<compile_context>
chip_gen: v7x
topology: tpu7x:2x2x1
jax: 0.10.0
libtpu: 0.0.40
codegen_flags: <defaults>
</compile_context>

<pallas_src>
import functools

import jax
import jax.numpy as jnp
import numpy as np
from jax.experimental import pallas as pl
from jax.experimental.pallas import tpu as pltpu

LANE = 128


# ----------------------------- Pallas kernel ------------------------------ #

def _fused_ufg_net_kernel(x_ref, w1_ref, w2_ref, d_ref, f1_ref, f2_ref,
                          b1_ref, b2_ref, *rest, num_tail, n, use_bn):
    if use_bn:
        scale_ref, shift_ref, o_ref = rest
    else:
        (o_ref,) = rest
        scale_ref = shift_ref = None

    # Stacked retained framelet blocks (num_tail*N, N) bf16 — loaded once,
    # reused by both layers.
    d_all = d_ref[...]

    def ufg_layer(x_bf16, w_ref, f_ref, b_ref):
        # x @ W on the MXU (bf16 operands, f32 accumulate).
        xw = jnp.dot(x_bf16, w_ref[...], preferred_element_type=jnp.float32)
        # Single stacked analysis matmul over the retained blocks:
        #   y = D_stack @ (x @ W)      (num_tail*N, N) @ (N, Cpad)
        y = jnp.dot(d_all, xw.astype(jnp.bfloat16),
                    preferred_element_type=jnp.float32)
        # Learned diagonal filter (shrinkage=None): one f32 VPU multiply,
        # filter loaded once for the whole stack (not per block).
        y = f_ref[...] * y
        y_b = y.astype(jnp.bfloat16)
        # Reconstruction:  out = sum_k D_k @ y_k  over static row slices
        # (blockwise equivalent of D_rec @ y[crop_len:]; d_rec never built,
        # cropped rows never computed).
        acc = jnp.dot(d_all[0:n], y_b[0:n], preferred_element_type=jnp.float32)
        for k in range(1, num_tail):
            acc = acc + jnp.dot(d_all[k * n:(k + 1) * n], y_b[k * n:(k + 1) * n],
                                preferred_element_type=jnp.float32)
        return acc + b_ref[...]

    # ---- GConv1 + folded BatchNorm1d(eval) + ReLU (epilogue stays f32) ----
    h = ufg_layer(x_ref[...], w1_ref, f1_ref, b1_ref)
    if use_bn:
        h = h * scale_ref[...] + shift_ref[...]
    h = jnp.maximum(h, 0.0)
    # TODO(synk): nn.Dropout is identity in eval mode; training-mode dropout omitted.

    # ---- GConv2 (no epilogue); h stays resident in VMEM/vregs ----
    out = ufg_layer(h.astype(jnp.bfloat16), w2_ref, f2_ref, b2_ref)
    o_ref[...] = out.astype(o_ref.dtype)


def fused_ufg_net(x_bf16, w1p, w2p, d_stack, f1_stack, f2_stack, b1p, b2p,
                  bn_scale=None, bn_shift=None):
    """Single fused pallas_call implementing Net(x) (both UFGConv layers)."""
    use_bn = bn_scale is not None
    n, cin = x_bf16.shape
    cpad = w1p.shape[1]
    num_tail = d_stack.shape[0] // n

    args = [x_bf16, w1p, w2p, d_stack, f1_stack, f2_stack, b1p, b2p]
    if use_bn:
        args += [bn_scale, bn_shift]

    kernel = functools.partial(_fused_ufg_net_kernel,
                               num_tail=num_tail, n=n, use_bn=use_bn)

    def layer_flops(cin_l):
        return (2 * n * cin_l * cpad                 # x @ W
                + 2 * (num_tail * n) * n * cpad      # stacked analysis
                + num_tail * 2 * n * n * cpad)       # reconstruction
    flops = layer_flops(cin) + layer_flops(cpad)
    bytes_accessed = (sum(int(np.prod(a.shape)) * a.dtype.itemsize for a in args)
                      + n * cpad * 4)

    vspec = pl.BlockSpec(memory_space=pltpu.MemorySpace.VMEM)
    return pl.pallas_call(
        kernel,
        out_shape=jax.ShapeDtypeStruct((n, cpad), jnp.float32),
        in_specs=[vspec] * len(args),
        out_specs=vspec,
        cost_estimate=pl.CostEstimate(flops=flops, transcendentals=0,
                                      bytes_accessed=bytes_accessed),
    )(*args)


# ------------------------- Module-level forward ---------------------------- #

class GraphAttentionEmbeddingPallas:
    """Deterministic-parameter re-implementation of GraphAttentionEmbedding."""

    def __init__(self, in_channels, out_channels, num_nodes, r=2, Lev=2,
                 batch_norm=True, seed=0):
        self.r, self.Lev, self.N = r, Lev, num_nodes
        self.out_channels = out_channels
        self.crop_len = (Lev - 1) * num_nodes
        self.num_tail = r * Lev - (Lev - 1)      # retained framelet blocks
        self.batch_norm = batch_norm
        self.cpad = ((out_channels + LANE - 1) // LANE) * LANE
        key = jax.random.PRNGKey(seed)
        ks = jax.random.split(key, 4)

        def xavier(k, shape):
            fan_in, fan_out = shape
            lim = float(np.sqrt(6.0 / (fan_in + fan_out)))
            return jax.random.uniform(k, shape, jnp.float32, -lim, lim)

        rlev_n = r * Lev * num_nodes
        # f32 master parameters (also used by the reference).
        self.w1 = xavier(ks[0], (in_channels, out_channels))
        self.f1 = jax.random.uniform(ks[1], (rlev_n, 1), jnp.float32, 0.9, 1.1)
        self.b1 = jnp.zeros((1, out_channels), jnp.float32)
        self.w2 = xavier(ks[2], (out_channels, out_channels))
        self.f2 = jax.random.uniform(ks[3], (rlev_n, 1), jnp.float32, 0.9, 1.1)
        self.b2 = jnp.zeros((1, out_channels), jnp.float32)

        # BatchNorm1d(out_channels), eval mode (running_mean=0, running_var=1),
        # folded into a per-channel scale/shift.
        gamma = 1.0 + 0.01 * jnp.arange(out_channels, dtype=jnp.float32)
        beta = 0.01 * jnp.arange(out_channels, dtype=jnp.float32)
        running_mean = jnp.zeros((out_channels,), jnp.float32)
        running_var = jnp.ones((out_channels,), jnp.float32)
        eps = 1e-5
        scale = gamma / jnp.sqrt(running_var + eps)
        shift = beta - running_mean * scale
        self.bn_scale = scale.reshape(1, -1)
        self.bn_shift = shift.reshape(1, -1)

        # --- Kernel-side parameters: lane-padded to Cpad, matmul weights bf16,
        #     epilogue params f32.  Prepared once at init. ---
        pad_c = self.cpad - out_channels
        self.w1_k = jnp.pad(self.w1, ((0, 0), (0, pad_c))).astype(jnp.bfloat16)
        self.w2_k = jnp.pad(self.w2, ((0, pad_c), (0, pad_c))).astype(jnp.bfloat16)
        self.b1_k = jnp.pad(self.b1, ((0, 0), (0, pad_c)))
        self.b2_k = jnp.pad(self.b2, ((0, 0), (0, pad_c)))
        # Only the non-cropped filter rows are ever used; pre-slice once (f32).
        self.f1_k = self.f1[self.crop_len:]              # (num_tail*N, 1)
        self.f2_k = self.f2[self.crop_len:]
        self.bn_scale_k = jnp.pad(self.bn_scale, ((0, 0), (0, pad_c)),
                                  constant_values=1.0)
        self.bn_shift_k = jnp.pad(self.bn_shift, ((0, 0), (0, pad_c)))

    def __call__(self, x, d_list, n_id):
        # TODO(synk): n_id is forwarded by the original module but not consumed by Net's conv.
        del n_id
        # Retained tail blocks stacked once into a single (num_tail*N, N) bf16
        # array (d_all / d_rec never materialized).  If d_list is static across
        # calls, this concatenate+cast can be hoisted to init.
        d_stack = jnp.concatenate(
            [d.astype(jnp.bfloat16) for d in d_list[self.Lev - 1:]], axis=0)
        out = fused_ufg_net(
            x.astype(jnp.bfloat16), self.w1_k, self.w2_k, d_stack,
            self.f1_k, self.f2_k, self.b1_k, self.b2_k,
            self.bn_scale_k if self.batch_norm else None,
            self.bn_shift_k if self.batch_norm else None)
        # Slice the lane-padded output back to the real channel count.
        return out[:, :self.out_channels]


# ---------------------------- Reference (JAX) ------------------------------ #

def _reference(model, x, d_list):
    # Original concatenated-matrix formulation (full D_all + crop + D_rec),
    # mirroring the kernel's bf16-operand / f32-accumulate arithmetic so the
    # blockwise / padded kernel can be validated at tight tolerance.
    bf, f32 = jnp.bfloat16, jnp.float32
    d_all = jnp.concatenate(d_list, axis=0).astype(bf)                  # (r*Lev*N, N)
    d_rec = jnp.concatenate(d_list[model.Lev - 1:], axis=1).astype(bf)  # (N, tail*N)

    def layer(xin, w, f, b):
        xw = jnp.dot(xin.astype(bf), w.astype(bf), preferred_element_type=f32)
        y = f * jnp.dot(d_all, xw.astype(bf), preferred_element_type=f32)
        y = y[model.crop_len:, :].astype(bf)
        return jnp.dot(d_rec, y, preferred_element_type=f32) + b

    h = layer(x, model.w1, model.f1, model.b1)
    if model.batch_norm:
        h = h * model.bn_scale + model.bn_shift
    h = jnp.maximum(h, 0.0)
    return layer(h, model.w2, model.f2, model.b2)


# --------------------------------- Main ------------------------------------ #

if __name__ == "__main__":
    in_channels, out_channels, num_nodes = 16, 32, 64
    r, Lev = 2, 2

    key = jax.random.PRNGKey(0)
    kx, *kd = jax.random.split(key, 1 + r * Lev)
    x = jax.random.normal(kx, (num_nodes, in_channels), jnp.float32)
    # synthetic dense framelet transform matrices (stand-ins for sparse d_list)
    d_list = [jax.random.normal(k, (num_nodes, num_nodes), jnp.float32)
              / np.sqrt(num_nodes) for k in kd]
    n_id = jnp.arange(num_nodes, dtype=jnp.int32)

    model = GraphAttentionEmbeddingPallas(in_channels, out_channels, num_nodes,
                                          r=r, Lev=Lev, batch_norm=True, seed=0)

    out = model(x, d_list, n_id)
    out = jax.block_until_ready(out)

    ref = _reference(model, x, d_list)
    np.testing.assert_allclose(np.asarray(out), np.asarray(ref),
                               rtol=2e-3, atol=2e-3)
    print("KERNEL_OK")
</pallas_src>

<mosaic_0001>
module attributes {stable_mosaic.version = 11 : i64} {
  func.func @_fused_ufg_net_kernel(%arg0: memref<64x16xbf16, #tpu.memory_space<vmem>>, %arg1: memref<16x128xbf16, #tpu.memory_space<vmem>>, %arg2: memref<128x128xbf16, #tpu.memory_space<vmem>>, %arg3: memref<192x64xbf16, #tpu.memory_space<vmem>>, %arg4: memref<192x1xf32, #tpu.memory_space<vmem>>, %arg5: memref<192x1xf32, #tpu.memory_space<vmem>>, %arg6: memref<1x128xf32, #tpu.memory_space<vmem>>, %arg7: memref<1x128xf32, #tpu.memory_space<vmem>>, %arg8: memref<1x128xf32, #tpu.memory_space<vmem>>, %arg9: memref<1x128xf32, #tpu.memory_space<vmem>>, %arg10: memref<64x128xf32, #tpu.memory_space<vmem>>) attributes {dimension_semantics = [], scalar_prefetch = 0 : i64, scratch_operands = 0 : i64, tpu.core_type = #tpu.core_type<tc>} {
    %c0 = arith.constant 0 : index
    %c0_0 = arith.constant 0 : index
    %0 = vector.load %arg3[%c0, %c0_0] : memref<192x64xbf16, #tpu.memory_space<vmem>>, vector<192x64xbf16>
    %c0_1 = arith.constant 0 : index
    %c0_2 = arith.constant 0 : index
    %1 = vector.load %arg0[%c0_1, %c0_2] : memref<64x16xbf16, #tpu.memory_space<vmem>>, vector<64x16xbf16>
    %c0_3 = arith.constant 0 : index
    %c0_4 = arith.constant 0 : index
    %2 = vector.load %arg1[%c0_3, %c0_4] : memref<16x128xbf16, #tpu.memory_space<vmem>>, vector<16x128xbf16>
    %cst = arith.constant dense<0.000000e+00> : vector<64x128xf32>
    %3 = tpu.matmul %1, %2, %cst {dimension_numbers = #tpu.dot_dimension_numbers<[1], [0], [0], [1], [0, 0, 1, 1], [], []>} : vector<64x16xbf16>, vector<16x128xbf16>, vector<64x128xf32> -> vector<64x128xf32>
    %4 = arith.truncf %3 : vector<64x128xf32> to vector<64x128xbf16>
    %cst_5 = arith.constant dense<0.000000e+00> : vector<192x128xf32>
    %5 = tpu.matmul %0, %4, %cst_5 {dimension_numbers = #tpu.dot_dimension_numbers<[1], [0], [0], [1], [0, 0, 1, 1], [], []>} : vector<192x64xbf16>, vector<64x128xbf16>, vector<192x128xf32> -> vector<192x128xf32>
    %c0_6 = arith.constant 0 : index
    %c0_7 = arith.constant 0 : index
    %6 = vector.load %arg4[%c0_6, %c0_7] : memref<192x1xf32, #tpu.memory_space<vmem>>, vector<192x1xf32>
    %7 = vector.broadcast %6 : vector<192x1xf32> to vector<192x128xf32>
    %8 = arith.mulf %7, %5 : vector<192x128xf32>
    %9 = arith.truncf %8 : vector<192x128xf32> to vector<192x128xbf16>
    %10 = vector.extract_strided_slice %0 {offsets = [0, 0], sizes = [64, 64], strides = [1, 1]} : vector<192x64xbf16> to vector<64x64xbf16>
    %11 = vector.extract_strided_slice %9 {offsets = [0, 0], sizes = [64, 128], strides = [1, 1]} : vector<192x128xbf16> to vector<64x128xbf16>
    %cst_8 = arith.constant dense<0.000000e+00> : vector<64x128xf32>
    %12 = tpu.matmul %10, %11, %cst_8 {dimension_numbers = #tpu.dot_dimension_numbers<[1], [0], [0], [1], [0, 0, 1, 1], [], []>} : vector<64x64xbf16>, vector<64x128xbf16>, vector<64x128xf32> -> vector<64x128xf32>
    %13 = vector.extract_strided_slice %0 {offsets = [64, 0], sizes = [64, 64], strides = [1, 1]} : vector<192x64xbf16> to vector<64x64xbf16>
    %14 = vector.extract_strided_slice %9 {offsets = [64, 0], sizes = [64, 128], strides = [1, 1]} : vector<192x128xbf16> to vector<64x128xbf16>
    %cst_9 = arith.constant dense<0.000000e+00> : vector<64x128xf32>
    %15 = tpu.matmul %13, %14, %cst_9 {dimension_numbers = #tpu.dot_dimension_numbers<[1], [0], [0], [1], [0, 0, 1, 1], [], []>} : vector<64x64xbf16>, vector<64x128xbf16>, vector<64x128xf32> -> vector<64x128xf32>
    %16 = arith.addf %12, %15 : vector<64x128xf32>
    %17 = vector.extract_strided_slice %0 {offsets = [128, 0], sizes = [64, 64], strides = [1, 1]} : vector<192x64xbf16> to vector<64x64xbf16>
    %18 = vector.extract_strided_slice %9 {offsets = [128, 0], sizes = [64, 128], strides = [1, 1]} : vector<192x128xbf16> to vector<64x128xbf16>
    %cst_10 = arith.constant dense<0.000000e+00> : vector<64x128xf32>
    %19 = tpu.matmul %17, %18, %cst_10 {dimension_numbers = #tpu.dot_dimension_numbers<[1], [0], [0], [1], [0, 0, 1, 1], [], []>} : vector<64x64xbf16>, vector<64x128xbf16>, vector<64x128xf32> -> vector<64x128xf32>
    %20 = arith.addf %16, %19 : vector<64x128xf32>
    %c0_11 = arith.constant 0 : index
    %c0_12 = arith.constant 0 : index
    %21 = vector.load %arg6[%c0_11, %c0_12] : memref<1x128xf32, #tpu.memory_space<vmem>>, vector<1x128xf32>
    %22 = vector.broadcast %21 : vector<1x128xf32> to vector<64x128xf32>
    %23 = arith.addf %20, %22 : vector<64x128xf32>
    %c0_13 = arith.constant 0 : index
    %c0_14 = arith.constant 0 : index
    %24 = vector.load %arg8[%c0_13, %c0_14] : memref<1x128xf32, #tpu.memory_space<vmem>>, vector<1x128xf32>
    %25 = vector.broadcast %24 : vector<1x128xf32> to vector<64x128xf32>
    %26 = arith.mulf %23, %25 : vector<64x128xf32>
    %c0_15 = arith.constant 0 : index
    %c0_16 = arith.constant 0 : index
    %27 = vector.load %arg9[%c0_15, %c0_16] : memref<1x128xf32, #tpu.memory_space<vmem>>, vector<1x128xf32>
    %28 = vector.broadcast %27 : vector<1x128xf32> to vector<64x128xf32>
    %29 = arith.addf %26, %28 : vector<64x128xf32>
    %cst_17 = arith.constant 0.000000e+00 : f32
    %30 = vector.broadcast %cst_17 : f32 to vector<64x128xf32>
    %31 = arith.maximumf %29, %30 : vector<64x128xf32>
    %32 = arith.truncf %31 : vector<64x128xf32> to vector<64x128xbf16>
    %c0_18 = arith.constant 0 : index
    %c0_19 = arith.constant 0 : index
    %33 = vector.load %arg2[%c0_18, %c0_19] : memref<128x128xbf16, #tpu.memory_space<vmem>>, vector<128x128xbf16>
    %cst_20 = arith.constant dense<0.000000e+00> : vector<64x128xf32>
    %34 = tpu.matmul %32, %33, %cst_20 {dimension_numbers = #tpu.dot_dimension_numbers<[1], [0], [0], [1], [0, 0, 1, 1], [], []>} : vector<64x128xbf16>, vector<128x128xbf16>, vector<64x128xf32> -> vector<64x128xf32>
    %35 = arith.truncf %34 : vector<64x128xf32> to vector<64x128xbf16>
    %cst_21 = arith.constant dense<0.000000e+00> : vector<192x128xf32>
    %36 = tpu.matmul %0, %35, %cst_21 {dimension_numbers = #tpu.dot_dimension_numbers<[1], [0], [0], [1], [0, 0, 1, 1], [], []>} : vector<192x64xbf16>, vector<64x128xbf16>, vector<192x128xf32> -> vector<192x128xf32>
    %c0_22 = arith.constant 0 : index
    %c0_23 = arith.constant 0 : index
    %37 = vector.load %arg5[%c0_22, %c0_23] : memref<192x1xf32, #tpu.memory_space<vmem>>, vector<192x1xf32>
    %38 = vector.broadcast %37 : vector<192x1xf32> to vector<192x128xf32>
    %39 = arith.mulf %38, %36 : vector<192x128xf32>
    %40 = arith.truncf %39 : vector<192x128xf32> to vector<192x128xbf16>
    %41 = vector.extract_strided_slice %0 {offsets = [0, 0], sizes = [64, 64], strides = [1, 1]} : vector<192x64xbf16> to vector<64x64xbf16>
    %42 = vector.extract_strided_slice %40 {offsets = [0, 0], sizes = [64, 128], strides = [1, 1]} : vector<192x128xbf16> to vector<64x128xbf16>
    %cst_24 = arith.constant dense<0.000000e+00> : vector<64x128xf32>
    %43 = tpu.matmul %41, %42, %cst_24 {dimension_numbers = #tpu.dot_dimension_numbers<[1], [0], [0], [1], [0, 0, 1, 1], [], []>} : vector<64x64xbf16>, vector<64x128xbf16>, vector<64x128xf32> -> vector<64x128xf32>
    %44 = vector.extract_strided_slice %0 {offsets = [64, 0], sizes = [64, 64], strides = [1, 1]} : vector<192x64xbf16> to vector<64x64xbf16>
    %45 = vector.extract_strided_slice %40 {offsets = [64, 0], sizes = [64, 128], strides = [1, 1]} : vector<192x128xbf16> to vector<64x128xbf16>
    %cst_25 = arith.constant dense<0.000000e+00> : vector<64x128xf32>
    %46 = tpu.matmul %44, %45, %cst_25 {dimension_numbers = #tpu.dot_dimension_numbers<[1], [0], [0], [1], [0, 0, 1, 1], [], []>} : vector<64x64xbf16>, vector<64x128xbf16>, vector<64x128xf32> -> vector<64x128xf32>
    %47 = arith.addf %43, %46 : vector<64x128xf32>
    %48 = vector.extract_strided_slice %0 {offsets = [128, 0], sizes = [64, 64], strides = [1, 1]} : vector<192x64xbf16> to vector<64x64xbf16>
    %49 = vector.extract_strided_slice %40 {offsets = [128, 0], sizes = [64, 128], strides = [1, 1]} : vector<192x128xbf16> to vector<64x128xbf16>
    %cst_26 = arith.constant dense<0.000000e+00> : vector<64x128xf32>
    %50 = tpu.matmul %48, %49, %cst_26 {dimension_numbers = #tpu.dot_dimension_numbers<[1], [0], [0], [1], [0, 0, 1, 1], [], []>} : vector<64x64xbf16>, vector<64x128xbf16>, vector<64x128xf32> -> vector<64x128xf32>
    %51 = arith.addf %47, %50 : vector<64x128xf32>
    %c0_27 = arith.constant 0 : index
    %c0_28 = arith.constant 0 : index
    %52 = vector.load %arg7[%c0_27, %c0_28] : memref<1x128xf32, #tpu.memory_space<vmem>>, vector<1x128xf32>
    %53 = vector.broadcast %52 : vector<1x128xf32> to vector<64x128xf32>
    %54 = arith.addf %51, %53 : vector<64x128xf32>
    %c0_29 = arith.constant 0 : index
    %c0_30 = arith.constant 0 : index
    %55 = vector.load %arg10[%c0_29, %c0_30] : memref<64x128xf32, #tpu.memory_space<vmem>>, vector<64x128xf32>
    tpu.vector_store %arg10[%c0_29, %c0_30], %54 {strides = array<i32>} : memref<64x128xf32, #tpu.memory_space<vmem>>, vector<64x128xf32>,
    return
  }
}

</mosaic_0001>

<llo_original>
// kernel: tpu_custom_call.1
$region0: #{tpu_custom_call.1}
  #allocation0 [shape = 'u32[]', space=smem, size = 0x4, offset = 0x4, fixed_abs, tag = 'smem constant byte address 0x4 - core index']
  #allocation1 [shape = 'u32[144,128]{1,0:T(1,128)}', space=vmem, size = 0x12000, scoped, tag = 'internal scratch']
  %s0 = inlined_call_operand.vmem [shape: bf16[64,16], index: 0, kind: input, shape index: {}]
  %s1 = inlined_call_operand.vmem [shape: bf16[16,128], index: 1, kind: input, shape index: {}]
  %s2 = inlined_call_operand.vmem [shape: bf16[128,128], index: 2, kind: input, shape index: {}]
  %s3 = inlined_call_operand.vmem [shape: bf16[192,64], index: 3, kind: input, shape index: {}]
  %s4 = inlined_call_operand.vmem [shape: f32[192,1], index: 4, kind: input, shape index: {}]
  %s5 = inlined_call_operand.vmem [shape: f32[192,1], index: 5, kind: input, shape index: {}]
  %s6 = inlined_call_operand.vmem [shape: f32[1,128], index: 6, kind: input, shape index: {}]
  %s7 = inlined_call_operand.vmem [shape: f32[1,128], index: 7, kind: input, shape index: {}]
  %s8 = inlined_call_operand.vmem [shape: f32[1,128], index: 8, kind: input, shape index: {}]
  %s9 = inlined_call_operand.vmem [shape: f32[1,128], index: 9, kind: input, shape index: {}]
  %s10 = inlined_call_operand.hbm [shape: f32[64,128], index: 10, kind: output, shape index: {}]
  %s11 = sld [smem:[#allocation0]]
  $region50: #{tpu_custom_call.1} parent=0
    _
  %s13 = ssub.s32 1, %s11
  %s14 = scalar_select 0, %s13, %s11
  $region1: #{tpu_custom_call.1} parent=0
    #allocation2 [shape = 'u8[32768]{0}', space=vmem, size = 0x8000, scoped, tag = 'output window, operand 0, single buffered']
    #allocation3 [shape = 's32[1]{0}', space=sflag, size = 0x4, scoped, tag = 'scoped memory for tpu_custom_call.1']
    %15 = vsyncpa [#allocation3], 0
    // Predicated region
    $region2: #{tpu_custom_call.1} parent=1 // pred_check
      _
    $region3: #{tpu_custom_call.1} parent=1 // pred_check_branch
      %17 = sbr.rel (0) target = $region5
    $region4: #{tpu_custom_call.1} parent=1 // pred_region
      _
    $region5: #{tpu_custom_call.1} parent=1 // pred_fallthru
      _
    // Predicated region
    $region6: #{tpu_custom_call.1} parent=1 // pred_check
      _
    $region7: #{tpu_custom_call.1} parent=1 // pred_check_branch
      %19 = sbr.rel (0) target = $region9
    $region8: #{tpu_custom_call.1} parent=1 // pred_region
      _
    $region9: #{tpu_custom_call.1} parent=1 // pred_fallthru
      _
    // Predicated region
    $region10: #{tpu_custom_call.1} parent=1 // pred_check
      _
    $region11: #{tpu_custom_call.1} parent=1 // pred_check_branch
      %21 = sbr.rel (0) target = $region13
    $region12: #{tpu_custom_call.1} parent=1 // pred_region
      _
    $region13: #{tpu_custom_call.1} parent=1 // pred_fallthru
      _
    // Predicated region
    $region14: #{tpu_custom_call.1} parent=1 // pred_check
      _
    $region15: #{tpu_custom_call.1} parent=1 // pred_check_branch
      %23 = sbr.rel (0) target = $region17
    $region16: #{tpu_custom_call.1} parent=1 // pred_region
      _
    $region17: #{tpu_custom_call.1} parent=1 // pred_fallthru
      _
    // Predicated region
    $region18: #{tpu_custom_call.1} parent=1 // pred_check
      _
    $region19: #{tpu_custom_call.1} parent=1 // pred_check_branch
      %25 = sbr.rel (0) target = $region21
    $region20: #{tpu_custom_call.1} parent=1 // pred_region
      _
    $region21: #{tpu_custom_call.1} parent=1 // pred_fallthru
      _
    // Predicated region
    $region22: #{tpu_custom_call.1} parent=1 // pred_check
      _
    $region23: #{tpu_custom_call.1} parent=1 // pred_check_branch
      %27 = sbr.rel (0) target = $region25
    $region24: #{tpu_custom_call.1} parent=1 // pred_region
      _
    $region25: #{tpu_custom_call.1} parent=1 // pred_fallthru
      _
    // Predicated region
    $region26: #{tpu_custom_call.1} parent=1 // pred_check
      _
    $region27: #{tpu_custom_call.1} parent=1 // pred_check_branch
      %29 = sbr.rel (0) target = $region29
    $region28: #{tpu_custom_call.1} parent=1 // pred_region
      _
    $region29: #{tpu_custom_call.1} parent=1 // pred_fallthru
      _
    // Predicated region
    $region30: #{tpu_custom_call.1} parent=1 // pred_check
      _
    $region31: #{tpu_custom_call.1} parent=1 // pred_check_branch
      %31 = sbr.rel (0) target = $region33
    $region32: #{tpu_custom_call.1} parent=1 // pred_region
      _
    $region33: #{tpu_custom_call.1} parent=1 // pred_fallthru
      _
    // Predicated region
    $region34: #{tpu_custom_call.1} parent=1 // pred_check
      _
    $region35: #{tpu_custom_call.1} parent=1 // pred_check_branch
      %33 = sbr.rel (0) target = $region37
    $region36: #{tpu_custom_call.1} parent=1 // pred_region
      _
    $region37: #{tpu_custom_call.1} parent=1 // pred_fallthru
      _
    // Predicated region
    $region38: #{tpu_custom_call.1} parent=1 // pred_check
      _
    $region39: #{tpu_custom_call.1} parent=1 // pred_check_branch
      %35 = sbr.rel (0) target = $region41
    $region40: #{tpu_custom_call.1} parent=1 // pred_region
      _
    $region41: #{tpu_custom_call.1} parent=1 // pred_fallthru
      _
    %v37 = vld [vmem:[%s3] sm:$0xf]
    %v38 = vld [vmem:[%s3 + $0x4] sm:$0xf]
    %v39 = vld [vmem:[%s3 + $0x8] sm:$0xf]
    %v40 = vld [vmem:[%s3 + $0xc] sm:$0xf]
    %v41 = vld [vmem:[%s3 + $0x10] sm:$0xf]
    %v42 = vld [vmem:[%s3 + $0x14] sm:$0xf]
    %v43 = vld [vmem:[%s3 + $0x18] sm:$0xf]
    %v44 = vld [vmem:[%s3 + $0x1c] sm:$0xf]
    %v45 = vld [vmem:[%s3 + $0x20] sm:$0xf]
    %v46 = vld [vmem:[%s3 + $0x24] sm:$0xf]
    %v47 = vld [vmem:[%s3 + $0x28] sm:$0xf]
    %v48 = vld [vmem:[%s3 + $0x2c] sm:$0xf]
    %v49 = vld [vmem:[%s3 + $0x30] sm:$0xf]
    %v50 = vld [vmem:[%s3 + $0x34] sm:$0xf]
    %v51 = vld [vmem:[%s3 + $0x38] sm:$0xf]
    %v52 = vld [vmem:[%s3 + $0x3c] sm:$0xf]
    %v53 = vld [vmem:[%s3 + $0x40] sm:$0xf]
    %v54 = vld [vmem:[%s3 + $0x44] sm:$0xf]
    %v55 = vld [vmem:[%s3 + $0x48] sm:$0xf]
    %v56 = vld [vmem:[%s3 + $0x4c] sm:$0xf]
    %v57 = vld [vmem:[%s3 + $0x50] sm:$0xf]
    %v58 = vld [vmem:[%s3 + $0x54] sm:$0xf]
    %v59 = vld [vmem:[%s3 + $0x58] sm:$0xf]
    %v60 = vld [vmem:[%s3 + $0x5c] sm:$0xf]
    %v61 = vld [vmem:[%s0] sm:$0xf]
    %v62 = vld [vmem:[%s0 + $0x4] sm:$0xf]
    %v63 = vld [vmem:[%s0 + $0x8] sm:$0xf]
    %v64 = vld [vmem:[%s0 + $0xc] sm:$0xf]
    %v65 = vld [vmem:[%s0 + $0x10] sm:$0xf]
    %v66 = vld [vmem:[%s0 + $0x14] sm:$0xf]
    %v67 = vld [vmem:[%s0 + $0x18] sm:$0xf]
    %v68 = vld [vmem:[%s0 + $0x1c] sm:$0xf]
    %v69 = vld [vmem:[%s1] sm:$0xf]
    %v70 = vld [vmem:[%s1 + $0x4] sm:$0xf]
    %v79 = vunpack.c.l.b16 %v61
    %v80 = vunpack.c.l.b16 %v62
    %v81 = vunpack.c.l.b16 %v63
    %v82 = vunpack.c.l.b16 %v64
    %v83 = vunpack.c.l.b16 %v65
    %v84 = vunpack.c.l.b16 %v66
    %v85 = vunpack.c.l.b16 %v67
    %v86 = vunpack.c.l.b16 %v68
    %v87 = vpack.c.b16 %v80, %v79
    %v88 = vpack.c.b16 %v82, %v81
    %v89 = vpack.c.b16 %v84, %v83
    %v90 = vpack.c.b16 %v86, %v85
    %v93 = vunpack.c.l.b16 %v69
    %v94 = vunpack.c.l.b16 %v70
    %v95 = vpack.c.b16 %v94, %v93
    %vm97 = vcmask 130048
    %v99 = vsel %vm97, %v87, 0
    %v102 = vsel %vm97, %v88, 0
    %v105 = vsel %vm97, %v89, 0
    %v108 = vsel %vm97, %v90, 0
    %110 = vmatprep.subr.bf16.mxu0 0
    %111 = vmatpush1.bf16.msra.mxu0 %v95
    %112 = vmatprep.subr.bf16.mxu0 0
    %113 = vmatpush1.bf16.msra.mxu0 0
    %114 = vmatprep.subr.bf16.mxu0 0
    %115 = vmatpush1.bf16.msra.mxu0 0
    %116 = vmatprep.subr.bf16.mxu0 0
    %117 = vmatpush1.bf16.msra.mxu0 0
    %118 = vmatprep.subr.bf16.mxu0 0
    %119 = vmatpush1.bf16.msra.mxu0 0
    %120 = vmatprep.subr.bf16.mxu0 0
    %121 = vmatpush1.bf16.msra.mxu0 0
    %122 = vmatprep.subr.bf16.mxu0 0
    %123 = vmatpush1.bf16.msra.mxu0 0
    %124 = vmatprep.subr.bf16.mxu0 0
    %125 = vmatpush1.bf16.msra.mxu0 0
    %126 = vmatprep.subr.bf16.mxu0 0
    %127 = vmatpush1.bf16.msra.mxu0 0
    %128 = vmatprep.subr.bf16.mxu0 0
    %129 = vmatpush1.bf16.msra.mxu0 0
    %130 = vmatprep.subr.bf16.mxu0 0
    %131 = vmatpush1.bf16.msra.mxu0 0
    %132 = vmatprep.subr.bf16.mxu0 0
    %133 = vmatpush1.bf16.msra.mxu0 0
    %134 = vmatprep.subr.bf16.mxu0 0
    %135 = vmatpush1.bf16.msra.mxu0 0
    %136 = vmatprep.subr.bf16.mxu0 0
    %137 = vmatpush1.bf16.msra.mxu0 0
    %138 = vmatprep.subr.bf16.mxu0 0
    %139 = vmatpush1.bf16.msra.mxu0 0
    %140 = vmatprep.subr.bf16.mxu0 0
    %141 = vmatpush1.bf16.msra.mxu0 0
    %142 = vmatprep.mubr.bf16.mxu0 0
    %143 = vmatmul.mubr.bf16.gmra.mrb[0].mxu0 %v99
    %v144 = vpop.f32.mrb[0].mxu0
    %v145 = vadd.f32 0.0, %v144
    %v146 = vpop.f32.mrb[0].mxu0
    %v147 = vpop.f32.mrb[0].mxu0
    %v148 = vadd.f32 0.0, %v147
    %v149 = vpop.f32.mrb[0].mxu0
    %150 = vmatprep.mubr.bf16.mxu0 0
    %151 = vmatmul.mubr.bf16.gmra.mrb[0].mxu0 %v102
    %v152 = vpop.f32.mrb[0].mxu0
    %v153 = vadd.f32 0.0, %v152
    %v154 = vpop.f32.mrb[0].mxu0
    %v155 = vpop.f32.mrb[0].mxu0
    %v156 = vadd.f32 0.0, %v155
    %v157 = vpop.f32.mrb[0].mxu0
    %158 = vmatprep.mubr.bf16.mxu0 0
    %159 = vmatmul.mubr.bf16.gmra.mrb[0].mxu0 %v105
    %v160 = vpop.f32.mrb[0].mxu0
    %v161 = vadd.f32 0.0, %v160
    %v162 = vpop.f32.mrb[0].mxu0
    %v163 = vpop.f32.mrb[0].mxu0
    %v164 = vadd.f32 0.0, %v163
    %v165 = vpop.f32.mrb[0].mxu0
    %166 = vmatprep.mubr.bf16.mxu0 0
    %167 = vmatmul.mubr.bf16.gmra.mrb[0].mxu0 %v108
    %v168 = vpop.f32.mrb[0].mxu0
    %v169 = vadd.f32 0.0, %v168
    %v170 = vpop.f32.mrb[0].mxu0
    %v171 = vpop.f32.mrb[0].mxu0
    %v172 = vadd.f32 0.0, %v171
    %v173 = vpop.f32.mrb[0].mxu0
    %174 = vdwg.mxu0
    %v175 = vpack.c.bf16 %v148, %v145
    %v176 = vpack.c.bf16 %v156, %v153
    %v177 = vpack.c.bf16 %v164, %v161
    %v178 = vpack.c.bf16 %v172, %v169
    %v203 = vunpack.c.l.b16 %v37
    %v204 = vunpack.c.l.b16 %v38
    %v205 = vunpack.c.l.b16 %v39
    %v206 = vunpack.c.l.b16 %v40
    %v207 = vunpack.c.l.b16 %v41
    %v208 = vunpack.c.l.b16 %v42
    %v209 = vunpack.c.l.b16 %v43
    %v210 = vunpack.c.l.b16 %v44
    %v211 = vunpack.c.l.b16 %v45
    %v212 = vunpack.c.l.b16 %v46
    %v213 = vunpack.c.l.b16 %v47
    %v214 = vunpack.c.l.b16 %v48
    %v215 = vunpack.c.l.b16 %v49
    %v216 = vunpack.c.l.b16 %v50
    %v217 = vunpack.c.l.b16 %v51
    %v218 = vunpack.c.l.b16 %v52
    %v219 = vunpack.c.l.b16 %v53
    %v220 = vunpack.c.l.b16 %v54
    %v221 = vunpack.c.l.b16 %v55
    %v222 = vunpack.c.l.b16 %v56
    %v223 = vunpack.c.l.b16 %v57
    %v224 = vunpack.c.l.b16 %v58
    %v225 = vunpack.c.l.b16 %v59
    %v226 = vunpack.c.l.b16 %v60
    %v227 = vpack.c.b16 %v204, %v203
    %v228 = vpack.c.b16 %v206, %v205
    %v229 = vpack.c.b16 %v208, %v207
    %v230 = vpack.c.b16 %v210, %v209
    %v231 = vpack.c.b16 %v212, %v211
    %v232 = vpack.c.b16 %v214, %v213
    %v233 = vpack.c.b16 %v216, %v215
    %v234 = vpack.c.b16 %v218, %v217
    %v235 = vpack.c.b16 %v220, %v219
    %v236 = vpack.c.b16 %v222, %v221
    %v237 = vpack.c.b16 %v224, %v223
    %v238 = vpack.c.b16 %v226, %v225
    %vm239 = vcmask 523264
    %v241 = vsel %vm239, %v227, 0
    %v244 = vsel %vm239, %v228, 0
    %v247 = vsel %vm239, %v229, 0
    %v250 = vsel %vm239, %v230, 0
    %v253 = vsel %vm239, %v231, 0
    %v256 = vsel %vm239, %v232, 0
    %v259 = vsel %vm239, %v233, 0
    %v262 = vsel %vm239, %v234, 0
    %v265 = vsel %vm239, %v235, 0
    %v268 = vsel %vm239, %v236, 0
    %v271 = vsel %vm239, %v237, 0
    %v274 = vsel %vm239, %v238, 0
    %276 = vmatprep.subr.bf16.mxu0 0
    %277 = vmatpush1.bf16.msra.mxu0 %v175
    %278 = vmatprep.subr.bf16.mxu0 0
    %279 = vmatpush1.bf16.msra.mxu0 %v176
    %280 = vmatprep.subr.bf16.mxu0 0
    %281 = vmatpush1.bf16.msra.mxu0 %v177
    %282 = vmatprep.subr.bf16.mxu0 0
    %283 = vmatpush1.bf16.msra.mxu0 %v178
    %284 = vmatprep.subr.bf16.mxu0 0
    %285 = vmatpush1.bf16.msra.mxu0 0
    %286 = vmatprep.subr.bf16.mxu0 0
    %287 = vmatpush1.bf16.msra.mxu0 0
    %288 = vmatprep.subr.bf16.mxu0 0
    %289 = vmatpush1.bf16.msra.mxu0 0
    %290 = vmatprep.subr.bf16.mxu0 0
    %291 = vmatpush1.bf16.msra.mxu0 0
    %292 = vmatprep.subr.bf16.mxu0 0
    %293 = vmatpush1.bf16.msra.mxu0 0
    %294 = vmatprep.subr.bf16.mxu0 0
    %295 = vmatpush1.bf16.msra.mxu0 0
    %296 = vmatprep.subr.bf16.mxu0 0
    %297 = vmatpush1.bf16.msra.mxu0 0
    %298 = vmatprep.subr.bf16.mxu0 0
    %299 = vmatpush1.bf16.msra.mxu0 0
    %300 = vmatprep.subr.bf16.mxu0 0
    %301 = vmatpush1.bf16.msra.mxu0 0
    %302 = vmatprep.subr.bf16.mxu0 0
    %303 = vmatpush1.bf16.msra.mxu0 0
    %304 = vmatprep.subr.bf16.mxu0 0
    %305 = vmatpush1.bf16.msra.mxu0 0
    %306 = vmatprep.subr.bf16.mxu0 0
    %307 = vmatpush1.bf16.msra.mxu0 0
    %308 = vmatprep.mubr.bf16.mxu0 0
    %309 = vmatmul.mubr.bf16.gmra.mrb[0].mxu0 %v241
    %v310 = vpop.f32.mrb[0].mxu0
    %v311 = vadd.f32 0.0, %v310
    %v312 = vpop.f32.mrb[0].mxu0
    %v313 = vpop.f32.mrb[0].mxu0
    %v314 = vadd.f32 0.0, %v313
    %v315 = vpop.f32.mrb[0].mxu0
    %316 = vmatprep.mubr.bf16.mxu0 0
    %317 = vmatmul.mubr.bf16.gmra.mrb[0].mxu0 %v244
    %v318 = vpop.f32.mrb[0].mxu0
    %v319 = vadd.f32 0.0, %v318
    %v320 = vpop.f32.mrb[0].mxu0
    %v321 = vpop.f32.mrb[0].mxu0
    %v322 = vadd.f32 0.0, %v321
    %v323 = vpop.f32.mrb[0].mxu0
    %324 = vmatprep.mubr.bf16.mxu0 0
    %325 = vmatmul.mubr.bf16.gmra.mrb[0].mxu0 %v247
    %v326 = vpop.f32.mrb[0].mxu0
    %v327 = vadd.f32 0.0, %v326
    %v328 = vpop.f32.mrb[0].mxu0
    %v329 = vpop.f32.mrb[0].mxu0
    %v330 = vadd.f32 0.0, %v329
    %v331 = vpop.f32.mrb[0].mxu0
    %332 = vmatprep.mubr.bf16.mxu0 0
    %333 = vmatmul.mubr.bf16.gmra.mrb[0].mxu0 %v250
    %v334 = vpop.f32.mrb[0].mxu0
    %v335 = vadd.f32 0.0, %v334
    %v336 = vpop.f32.mrb[0].mxu0
    %v337 = vpop.f32.mrb[0].mxu0
    %v338 = vadd.f32 0.0, %v337
    %v339 = vpop.f32.mrb[0].mxu0
    %340 = vmatprep.mubr.bf16.mxu0 0
    %341 = vmatmul.mubr.bf16.gmra.mrb[0].mxu0 %v253
    %v342 = vpop.f32.mrb[0].mxu0
    %v343 = vadd.f32 0.0, %v342
    %v344 = vpop.f32.mrb[0].mxu0
    %v345 = vpop.f32.mrb[0].mxu0
    %v346 = vadd.f32 0.0, %v345
    %v347 = vpop.f32.mrb[0].mxu0
    %348 = vmatprep.mubr.bf16.mxu0 0
    %349 = vmatmul.mubr.bf16.gmra.mrb[0].mxu0 %v256
    %v350 = vpop.f32.mrb[0].mxu0
    %v351 = vadd.f32 0.0, %v350
    %v352 = vpop.f32.mrb[0].mxu0
    %v353 = vpop.f32.mrb[0].mxu0
    %v354 = vadd.f32 0.0, %v353
    %v355 = vpop.f32.mrb[0].mxu0
    %356 = vmatprep.mubr.bf16.mxu0 0
    %357 = vmatmul.mubr.bf16.gmra.mrb[0].mxu0 %v259
    %v358 = vpop.f32.mrb[0].mxu0
    %v359 = vadd.f32 0.0, %v358
    %v360 = vpop.f32.mrb[0].mxu0
    %v361 = vpop.f32.mrb[0].mxu0
    %v362 = vadd.f32 0.0, %v361
    %v363 = vpop.f32.mrb[0].mxu0
    %364 = vmatprep.mubr.bf16.mxu0 0
    %365 = vmatmul.mubr.bf16.gmra.mrb[0].mxu0 %v262
    %v366 = vpop.f32.mrb[0].mxu0
    %v367 = vadd.f32 0.0, %v366
    %v368 = vpop.f32.mrb[0].mxu0
    %v369 = vpop.f32.mrb[0].mxu0
    %v370 = vadd.f32 0.0, %v369
    %v371 = vpop.f32.mrb[0].mxu0
    %372 = vmatprep.mubr.bf16.mxu0 0
    %373 = vmatmul.mubr.bf16.gmra.mrb[0].mxu0 %v265
    %v374 = vpop.f32.mrb[0].mxu0
    %v375 = vadd.f32 0.0, %v374
    %v376 = vpop.f32.mrb[0].mxu0
    %v377 = vpop.f32.mrb[0].mxu0
    %v378 = vadd.f32 0.0, %v377
    %v379 = vpop.f32.mrb[0].mxu0
    %380 = vmatprep.mubr.bf16.mxu0 0
    %381 = vmatmul.mubr.bf16.gmra.mrb[0].mxu0 %v268
    %v382 = vpop.f32.mrb[0].mxu0
    %v383 = vadd.f32 0.0, %v382
    %v384 = vpop.f32.mrb[0].mxu0
    %v385 = vpop.f32.mrb[0].mxu0
    %v386 = vadd.f32 0.0, %v385
    %v387 = vpop.f32.mrb[0].mxu0
    %388 = vmatprep.mubr.bf16.mxu0 0
    %389 = vmatmul.mubr.bf16.gmra.mrb[0].mxu0 %v271
    %v390 = vpop.f32.mrb[0].mxu0
    %v391 = vadd.f32 0.0, %v390
    %v392 = vpop.f32.mrb[0].mxu0
    %v393 = vpop.f32.mrb[0].mxu0
    %v394 = vadd.f32 0.0, %v393
    %v395 = vpop.f32.mrb[0].mxu0
    %396 = vmatprep.mubr.bf16.mxu0 0
    %397 = vmatmul.mubr.bf16.gmra.mrb[0].mxu0 %v274
    %v398 = vpop.f32.mrb[0].mxu0
    %v399 = vadd.f32 0.0, %v398
    %v400 = vpop.f32.mrb[0].mxu0
    %v401 = vpop.f32.mrb[0].mxu0
    %v402 = vadd.f32 0.0, %v401
    %v403 = vpop.f32.mrb[0].mxu0
    %404 = vdwg.mxu0
    %v405 = vld [vmem:[%s4] sm:$0xff]
    %v406 = vld [vmem:[%s4 + $0x8] sm:$0xff]
    %v407 = vld [vmem:[%s4 + $0x10] sm:$0xff]
    %v408 = vld [vmem:[%s4 + $0x18] sm:$0xff]
    %v409 = vld [vmem:[%s4 + $0x20] sm:$0xff]
    %v410 = vld [vmem:[%s4 + $0x28] sm:$0xff]
    %v411 = vld [vmem:[%s4 + $0x30] sm:$0xff]
    %v412 = vld [vmem:[%s4 + $0x38] sm:$0xff]
    %v413 = vld [vmem:[%s4 + $0x40] sm:$0xff]
    %v414 = vld [vmem:[%s4 + $0x48] sm:$0xff]
    %v415 = vld [vmem:[%s4 + $0x50] sm:$0xff]
    %v416 = vld [vmem:[%s4 + $0x58] sm:$0xff]
    %v417 = vld [vmem:[%s4 + $0x60] sm:$0xff]
    %v418 = vld [vmem:[%s4 + $0x68] sm:$0xff]
    %v419 = vld [vmem:[%s4 + $0x70] sm:$0xff]
    %v420 = vld [vmem:[%s4 + $0x78] sm:$0xff]
    %v421 = vld [vmem:[%s4 + $0x80] sm:$0xff]
    %v422 = vld [vmem:[%s4 + $0x88] sm:$0xff]
    %v423 = vld [vmem:[%s4 + $0x90] sm:$0xff]
    %v424 = vld [vmem:[%s4 + $0x98] sm:$0xff]
    %v425 = vld [vmem:[%s4 + $0xa0] sm:$0xff]
    %v426 = vld [vmem:[%s4 + $0xa8] sm:$0xff]
    %v427 = vld [vmem:[%s4 + $0xb0] sm:$0xff]
    %v428 = vld [vmem:[%s4 + $0xb8] sm:$0xff]
    %430 = vset.pattern.permute.xlu0 0
    %431 = vperm.xlu0 %430, %v405
    %v432 = vpop.permute.xlu0 %431
    %435 = vset.pattern.permute.xlu0 0
    %436 = vperm.xlu0 %435, %v406
    %v437 = vpop.permute.xlu0 %436
    %440 = vset.pattern.permute.xlu0 0
    %441 = vperm.xlu0 %440, %v407
    %v442 = vpop.permute.xlu0 %441
    %445 = vset.pattern.permute.xlu0 0
    %446 = vperm.xlu0 %445, %v408
    %v447 = vpop.permute.xlu0 %446
    %450 = vset.pattern.permute.xlu0 0
    %451 = vperm.xlu0 %450, %v409
    %v452 = vpop.permute.xlu0 %451
    %455 = vset.pattern.permute.xlu0 0
    %456 = vperm.xlu0 %455, %v410
    %v457 = vpop.permute.xlu0 %456
    %460 = vset.pattern.permute.xlu0 0
    %461 = vperm.xlu0 %460, %v411
    %v462 = vpop.permute.xlu0 %461
    %465 = vset.pattern.permute.xlu0 0
    %466 = vperm.xlu0 %465, %v412
    %v467 = vpop.permute.xlu0 %466
    %470 = vset.pattern.permute.xlu0 0
    %471 = vperm.xlu0 %470, %v413
    %v472 = vpop.permute.xlu0 %471
    %475 = vset.pattern.permute.xlu0 0
    %476 = vperm.xlu0 %475, %v414
    %v477 = vpop.permute.xlu0 %476
    %480 = vset.pattern.permute.xlu0 0
    %481 = vperm.xlu0 %480, %v415
    %v482 = vpop.permute.xlu0 %481
    %485 = vset.pattern.permute.xlu0 0
    %486 = vperm.xlu0 %485, %v416
    %v487 = vpop.permute.xlu0 %486
    %490 = vset.pattern.permute.xlu0 0
    %491 = vperm.xlu0 %490, %v417
    %v492 = vpop.permute.xlu0 %491
    %495 = vset.pattern.permute.xlu0 0
    %496 = vperm.xlu0 %495, %v418
    %v497 = vpop.permute.xlu0 %496
    %500 = vset.pattern.permute.xlu0 0
    %501 = vperm.xlu0 %500, %v419
    %v502 = vpop.permute.xlu0 %501
    %505 = vset.pattern.permute.xlu0 0
    %506 = vperm.xlu0 %505, %v420
    %v507 = vpop.permute.xlu0 %506
    %510 = vset.pattern.permute.xlu0 0
    %511 = vperm.xlu0 %510, %v421
    %v512 = vpop.permute.xlu0 %511
    %515 = vset.pattern.permute.xlu0 0
    %516 = vperm.xlu0 %515, %v422
    %v517 = vpop.permute.xlu0 %516
    %520 = vset.pattern.permute.xlu0 0
    %521 = vperm.xlu0 %520, %v423
    %v522 = vpop.permute.xlu0 %521
    %525 = vset.pattern.permute.xlu0 0
    %526 = vperm.xlu0 %525, %v424
    %v527 = vpop.permute.xlu0 %526
    %530 = vset.pattern.permute.xlu0 0
    %531 = vperm.xlu0 %530, %v425
    %v532 = vpop.permute.xlu0 %531
    %535 = vset.pattern.permute.xlu0 0
    %536 = vperm.xlu0 %535, %v426
    %v537 = vpop.permute.xlu0 %536
    %540 = vset.pattern.permute.xlu0 0
    %541 = vperm.xlu0 %540, %v427
    %v542 = vpop.permute.xlu0 %541
    %545 = vset.pattern.permute.xlu0 0
    %546 = vperm.xlu0 %545, %v428
    %v547 = vpop.permute.xlu0 %546
    %v549 = vmul.f32 %v432, %v311
    %v550 = vmul.f32 %v437, %v314
    %v551 = vmul.f32 %v442, %v319
    %v552 = vmul.f32 %v447, %v322
    %v553 = vmul.f32 %v452, %v327
    %v554 = vmul.f32 %v457, %v330
    %v555 = vmul.f32 %v462, %v335
    %v556 = vmul.f32 %v467, %v338
    %v557 = vmul.f32 %v472, %v343
    %v558 = vmul.f32 %v477, %v346
    %v559 = vmul.f32 %v482, %v351
    %v560 = vmul.f32 %v487, %v354
    %v561 = vmul.f32 %v492, %v359
    %v562 = vmul.f32 %v497, %v362
    %v563 = vmul.f32 %v502, %v367
    %v564 = vmul.f32 %v507, %v370
    %v565 = vmul.f32 %v512, %v375
    %v566 = vmul.f32 %v517, %v378
    %v567 = vmul.f32 %v522, %v383
    %v568 = vmul.f32 %v527, %v386
    %v569 = vmul.f32 %v532, %v391
    %v570 = vmul.f32 %v537, %v394
    %v571 = vmul.f32 %v542, %v399
    %v572 = vmul.f32 %v547, %v402
    %v573 = vpack.c.bf16 %v550, %v549
    %v574 = vpack.c.bf16 %v552, %v551
    %v575 = vpack.c.bf16 %v554, %v553
    %v576 = vpack.c.bf16 %v556, %v555
    %v577 = vpack.c.bf16 %v558, %v557
    %v578 = vpack.c.bf16 %v560, %v559
    %v579 = vpack.c.bf16 %v562, %v561
    %v580 = vpack.c.bf16 %v564, %v563
    %v581 = vpack.c.bf16 %v566, %v565
    %v582 = vpack.c.bf16 %v568, %v567
    %v583 = vpack.c.bf16 %v570, %v569
    %v584 = vpack.c.bf16 %v572, %v571
    %585 = vmatprep.subr.bf16.mxu0 0
    %586 = vmatpush1.bf16.msra.mxu0 %v577
    %587 = vmatprep.subr.bf16.mxu0 0
    %588 = vmatpush1.bf16.msra.mxu0 %v578
    %589 = vmatprep.subr.bf16.mxu0 0
    %590 = vmatpush1.bf16.msra.mxu0 %v579
    %591 = vmatprep.subr.bf16.mxu0 0
    %592 = vmatpush1.bf16.msra.mxu0 %v580
    %593 = vmatprep.subr.bf16.mxu0 0
    %594 = vmatpush1.bf16.msra.mxu0 0
    %595 = vmatprep.subr.bf16.mxu0 0
    %596 = vmatpush1.bf16.msra.mxu0 0
    %597 = vmatprep.subr.bf16.mxu0 0
    %598 = vmatpush1.bf16.msra.mxu0 0
    %599 = vmatprep.subr.bf16.mxu0 0
    %600 = vmatpush1.bf16.msra.mxu0 0
    %601 = vmatprep.subr.bf16.mxu0 0
    %602 = vmatpush1.bf16.msra.mxu0 0
    %603 = vmatprep.subr.bf16.mxu0 0
    %604 = vmatpush1.bf16.msra.mxu0 0
    %605 = vmatprep.subr.bf16.mxu0 0
    %606 = vmatpush1.bf16.msra.mxu0 0
    %607 = vmatprep.subr.bf16.mxu0 0
    %608 = vmatpush1.bf16.msra.mxu0 0
    %609 = vmatprep.subr.bf16.mxu0 0
    %610 = vmatpush1.bf16.msra.mxu0 0
    %611 = vmatprep.subr.bf16.mxu0 0
    %612 = vmatpush1.bf16.msra.mxu0 0
    %613 = vmatprep.subr.bf16.mxu0 0
    %614 = vmatpush1.bf16.msra.mxu0 0
    %615 = vmatprep.subr.bf16.mxu0 0
    %616 = vmatpush1.bf16.msra.mxu0 0
    %617 = vmatprep.mubr.bf16.mxu0 0
    %618 = vmatmul.mubr.bf16.gmra.mrb[0].mxu0 %v253
    %v619 = vpop.f32.mrb[0].mxu0
    %v620 = vadd.f32 0.0, %v619
    %v621 = vpop.f32.mrb[0].mxu0
    %v622 = vpop.f32.mrb[0].mxu0
    %v623 = vadd.f32 0.0, %v622
    %v624 = vpop.f32.mrb[0].mxu0
    %625 = vmatprep.mubr.bf16.mxu0 0
    %626 = vmatmul.mubr.bf16.gmra.mrb[0].mxu0 %v256
    %v627 = vpop.f32.mrb[0].mxu0
    %v628 = vadd.f32 0.0, %v627
    %v629 = vpop.f32.mrb[0].mxu0
    %v630 = vpop.f32.mrb[0].mxu0
    %v631 = vadd.f32 0.0, %v630
    %v632 = vpop.f32.mrb[0].mxu0
    %633 = vmatprep.mubr.bf16.mxu0 0
    %634 = vmatmul.mubr.bf16.gmra.mrb[0].mxu0 %v259
    %v635 = vpop.f32.mrb[0].mxu0
    %v636 = vadd.f32 0.0, %v635
    %v637 = vpop.f32.mrb[0].mxu0
    %v638 = vpop.f32.mrb[0].mxu0
    %v639 = vadd.f32 0.0, %v638
    %v640 = vpop.f32.mrb[0].mxu0
    %641 = vmatprep.mubr.bf16.mxu0 0
    %642 = vmatmul.mubr.bf16.gmra.mrb[0].mxu0 %v262
    %v643 = vpop.f32.mrb[0].mxu0
    %v644 = vadd.f32 0.0, %v643
    %v645 = vpop.f32.mrb[0].mxu0
    %v646 = vpop.f32.mrb[0].mxu0
    %v647 = vadd.f32 0.0, %v646
    %v648 = vpop.f32.mrb[0].mxu0
    %649 = vdwg.mxu0
    %650 = vmatprep.subr.bf16.mxu0 0
    %651 = vmatpush1.bf16.msra.mxu0 %v573
    %652 = vmatprep.subr.bf16.mxu0 0
    %653 = vmatpush1.bf16.msra.mxu0 %v574
    %654 = vmatprep.subr.bf16.mxu0 0
    %655 = vmatpush1.bf16.msra.mxu0 %v575
    %656 = vmatprep.subr.bf16.mxu0 0
    %657 = vmatpush1.bf16.msra.mxu0 %v576
    %658 = vmatprep.subr.bf16.mxu0 0
    %659 = vmatpush1.bf16.msra.mxu0 0
    %660 = vmatprep.subr.bf16.mxu0 0
    %661 = vmatpush1.bf16.msra.mxu0 0
    %662 = vmatprep.subr.bf16.mxu0 0
    %663 = vmatpush1.bf16.msra.mxu0 0
    %664 = vmatprep.subr.bf16.mxu0 0
    %665 = vmatpush1.bf16.msra.mxu0 0
    %666 = vmatprep.subr.bf16.mxu0 0
    %667 = vmatpush1.bf16.msra.mxu0 0
    %668 = vmatprep.subr.bf16.mxu0 0
    %669 = vmatpush1.bf16.msra.mxu0 0
    %670 = vmatprep.subr.bf16.mxu0 0
    %671 = vmatpush1.bf16.msra.mxu0 0
    %672 = vmatprep.subr.bf16.mxu0 0
    %673 = vmatpush1.bf16.msra.mxu0 0
    %674 = vmatprep.subr.bf16.mxu0 0
    %675 = vmatpush1.bf16.msra.mxu0 0
    %676 = vmatprep.subr.bf16.mxu0 0
    %677 = vmatpush1.bf16.msra.mxu0 0
    %678 = vmatprep.subr.bf16.mxu0 0
    %679 = vmatpush1.bf16.msra.mxu0 0
    %680 = vmatprep.subr.bf16.mxu0 0
    %681 = vmatpush1.bf16.msra.mxu0 0
    %682 = vmatprep.mubr.bf16.mxu0 0
    %683 = vmatmul.mubr.bf16.gmra.mrb[0].mxu0 %v241
    %v684 = vpop.f32.mrb[0].mxu0
    %v685 = vadd.f32 %v620, %v684
    %v686 = vpop.f32.mrb[0].mxu0
    %v687 = vpop.f32.mrb[0].mxu0
    %v688 = vadd.f32 %v623, %v687
    %v689 = vpop.f32.mrb[0].mxu0
    %690 = vmatprep.mubr.bf16.mxu0 0
    %691 = vmatmul.mubr.bf16.gmra.mrb[0].mxu0 %v244
    %v692 = vpop.f32.mrb[0].mxu0
    %v693 = vadd.f32 %v628, %v692
    %v694 = vpop.f32.mrb[0].mxu0
    %v695 = vpop.f32.mrb[0].mxu0
    %v696 = vadd.f32 %v631, %v695
    %v697 = vpop.f32.mrb[0].mxu0
    %698 = vmatprep.mubr.bf16.mxu0 0
    %699 = vmatmul.mubr.bf16.gmra.mrb[0].mxu0 %v247
    %v700 = vpop.f32.mrb[0].mxu0
    %v701 = vadd.f32 %v636, %v700
    %v702 = vpop.f32.mrb[0].mxu0
    %v703 = vpop.f32.mrb[0].mxu0
    %v704 = vadd.f32 %v639, %v703
    %v705 = vpop.f32.mrb[0].mxu0
    %706 = vmatprep.mubr.bf16.mxu0 0
    %707 = vmatmul.mubr.bf16.gmra.mrb[0].mxu0 %v250
    %v708 = vpop.f32.mrb[0].mxu0
    %v709 = vadd.f32 %v644, %v708
    %v710 = vpop.f32.mrb[0].mxu0
    %v711 = vpop.f32.mrb[0].mxu0
    %v712 = vadd.f32 %v647, %v711
    %v713 = vpop.f32.mrb[0].mxu0
    %714 = vdwg.mxu0
    %715 = vmatprep.subr.bf16.mxu0 0
    %716 = vmatpush1.bf16.msra.mxu0 %v581
    %717 = vmatprep.subr.bf16.mxu0 0
    %718 = vmatpush1.bf16.msra.mxu0 %v582
    %719 = vmatprep.subr.bf16.mxu0 0
    %720 = vmatpush1.bf16.msra.mxu0 %v583
    %721 = vmatprep.subr.bf16.mxu0 0
    %722 = vmatpush1.bf16.msra.mxu0 %v584
    %723 = vmatprep.subr.bf16.mxu0 0
    %724 = vmatpush1.bf16.msra.mxu0 0
    %725 = vmatprep.subr.bf16.mxu0 0
    %726 = vmatpush1.bf16.msra.mxu0 0
    %727 = vmatprep.subr.bf16.mxu0 0
    %728 = vmatpush1.bf16.msra.mxu0 0
    %729 = vmatprep.subr.bf16.mxu0 0
    %730 = vmatpush1.bf16.msra.mxu0 0
    %731 = vmatprep.subr.bf16.mxu0 0
    %732 = vmatpush1.bf16.msra.mxu0 0
    %733 = vmatprep.subr.bf16.mxu0 0
    %734 = vmatpush1.bf16.msra.mxu0 0
    %735 = vmatprep.subr.bf16.mxu0 0
    %736 = vmatpush1.bf16.msra.mxu0 0
    %737 = vmatprep.subr.bf16.mxu0 0
    %738 = vmatpush1.bf16.msra.mxu0 0
    %739 = vmatprep.subr.bf16.mxu0 0
    %740 = vmatpush1.bf16.msra.mxu0 0
    %741 = vmatprep.subr.bf16.mxu0 0
    %742 = vmatpush1.bf16.msra.mxu0 0
    %743 = vmatprep.subr.bf16.mxu0 0
    %744 = vmatpush1.bf16.msra.mxu0 0
    %745 = vmatprep.subr.bf16.mxu0 0
    %746 = vmatpush1.bf16.msra.mxu0 0
    %747 = vmatprep.mubr.bf16.mxu0 0
    %748 = vmatmul.mubr.bf16.gmra.mrb[0].mxu0 %v265
    %v749 = vpop.f32.mrb[0].mxu0
    %v750 = vadd.f32 0.0, %v749
    %v751 = vpop.f32.mrb[0].mxu0
    %v752 = vpop.f32.mrb[0].mxu0
    %v753 = vadd.f32 0.0, %v752
    %v754 = vpop.f32.mrb[0].mxu0
    %755 = vmatprep.mubr.bf16.mxu0 0
    %756 = vmatmul.mubr.bf16.gmra.mrb[0].mxu0 %v268
    %v757 = vpop.f32.mrb[0].mxu0
    %v758 = vadd.f32 0.0, %v757
    %v759 = vpop.f32.mrb[0].mxu0
    %v760 = vpop.f32.mrb[0].mxu0
    %v761 = vadd.f32 0.0, %v760
    %v762 = vpop.f32.mrb[0].mxu0
    %763 = vmatprep.mubr.bf16.mxu0 0
    %764 = vmatmul.mubr.bf16.gmra.mrb[0].mxu0 %v271
    %v765 = vpop.f32.mrb[0].mxu0
    %v766 = vadd.f32 0.0, %v765
    %v767 = vpop.f32.mrb[0].mxu0
    %v768 = vpop.f32.mrb[0].mxu0
    %v769 = vadd.f32 0.0, %v768
    %v770 = vpop.f32.mrb[0].mxu0
    %771 = vmatprep.mubr.bf16.mxu0 0
    %772 = vmatmul.mubr.bf16.gmra.mrb[0].mxu0 %v274
    %v773 = vpop.f32.mrb[0].mxu0
    %v774 = vadd.f32 0.0, %v773
    %v775 = vpop.f32.mrb[0].mxu0
    %v776 = vpop.f32.mrb[0].mxu0
    %v777 = vadd.f32 0.0, %v776
    %v778 = vpop.f32.mrb[0].mxu0
    %779 = vdwg.mxu0
    %v780 = vadd.f32 %v685, %v750
    %v781 = vadd.f32 %v688, %v753
    %v782 = vadd.f32 %v693, %v758
    %v783 = vadd.f32 %v696, %v761
    %v784 = vadd.f32 %v701, %v766
    %v785 = vadd.f32 %v704, %v769
    %v786 = vadd.f32 %v709, %v774
    %v787 = vadd.f32 %v712, %v777
    %v788 = vld [vmem:[%s6] sm:$0x1]
    %v790 = vlaneseq
    %v791 = vshrl.u32 %v790, 7
    %v792 = vsub.s32 0, %v791
    %v793 = vrot.slane %v788, %v792
    %v795 = vadd.f32 %v780, %v793
    %v796 = vadd.f32 %v781, %v793
    %v797 = vadd.f32 %v782, %v793
    %v798 = vadd.f32 %v783, %v793
    %v799 = vadd.f32 %v784, %v793
    %v800 = vadd.f32 %v785, %v793
    %v801 = vadd.f32 %v786, %v793
    %v802 = vadd.f32 %v787, %v793
    %v803 = vld [vmem:[%s8] sm:$0x1]
    %v805 = vlaneseq
    %v806 = vshrl.u32 %v805, 7
    %v807 = vsub.s32 0, %v806
    %v808 = vrot.slane %v803, %v807
    %v810 = vmul.f32 %v795, %v808
    %v811 = vmul.f32 %v796, %v808
    %v812 = vmul.f32 %v797, %v808
    %v813 = vmul.f32 %v798, %v808
    %v814 = vmul.f32 %v799, %v808
    %v815 = vmul.f32 %v800, %v808
    %v816 = vmul.f32 %v801, %v808
    %v817 = vmul.f32 %v802, %v808
    %v818 = vld [vmem:[%s9] sm:$0x1]
    %v820 = vlaneseq
    %v821 = vshrl.u32 %v820, 7
    %v822 = vsub.s32 0, %v821
    %v823 = vrot.slane %v818, %v822
    %v825 = vadd.f32 %v810, %v823
    %v826 = vadd.f32 %v811, %v823
    %v827 = vadd.f32 %v812, %v823
    %v828 = vadd.f32 %v813, %v823
    %v829 = vadd.f32 %v814, %v823
    %v830 = vadd.f32 %v815, %v823
    %v831 = vadd.f32 %v816, %v823
    %v832 = vadd.f32 %v817, %v823
    %v833 = vmax.f32 %v825, 0.0
    %v834 = vmax.f32 %v826, 0.0
    %v835 = vmax.f32 %v827, 0.0
    %v836 = vmax.f32 %v828, 0.0
    %v837 = vmax.f32 %v829, 0.0
    %v838 = vmax.f32 %v830, 0.0
    %v839 = vmax.f32 %v831, 0.0
    %v840 = vmax.f32 %v832, 0.0
    %v841 = vpack.c.bf16 %v834, %v833
    %v842 = vpack.c.bf16 %v836, %v835
    %v843 = vpack.c.bf16 %v838, %v837
    %v844 = vpack.c.bf16 %v840, %v839
    %v845 = vld [vmem:[%s2] sm:$0xf]
    %v846 = vld [vmem:[%s2 + $0x4] sm:$0xf]
    %v847 = vld [vmem:[%s2 + $0x8] sm:$0xf]
    %v848 = vld [vmem:[%s2 + $0xc] sm:$0xf]
    %v849 = vld [vmem:[%s2 + $0x10] sm:$0xf]
    %v850 = vld [vmem:[%s2 + $0x14] sm:$0xf]
    %v851 = vld [vmem:[%s2 + $0x18] sm:$0xf]
    %v852 = vld [vmem:[%s2 + $0x1c] sm:$0xf]
    %v853 = vld [vmem:[%s2 + $0x20] sm:$0xf]
    %v854 = vld [vmem:[%s2 + $0x24] sm:$0xf]
    %v855 = vld [vmem:[%s2 + $0x28] sm:$0xf]
    %v856 = vld [vmem:[%s2 + $0x2c] sm:$0xf]
    %v857 = vld [vmem:[%s2 + $0x30] sm:$0xf]
    %v858 = vld [vmem:[%s2 + $0x34] sm:$0xf]
    %v859 = vld [vmem:[%s2 + $0x38] sm:$0xf]
    %v860 = vld [vmem:[%s2 + $0x3c] sm:$0xf]
    %v877 = vunpack.c.l.b16 %v845
    %v878 = vunpack.c.l.b16 %v846
    %v879 = vunpack.c.l.b16 %v847
    %v880 = vunpack.c.l.b16 %v848
    %v881 = vunpack.c.l.b16 %v849
    %v882 = vunpack.c.l.b16 %v850
    %v883 = vunpack.c.l.b16 %v851
    %v884 = vunpack.c.l.b16 %v852
    %v885 = vunpack.c.l.b16 %v853
    %v886 = vunpack.c.l.b16 %v854
    %v887 = vunpack.c.l.b16 %v855
    %v888 = vunpack.c.l.b16 %v856
    %v889 = vunpack.c.l.b16 %v857
    %v890 = vunpack.c.l.b16 %v858
    %v891 = vunpack.c.l.b16 %v859
    %v892 = vunpack.c.l.b16 %v860
    %v893 = vpack.c.b16 %v878, %v877
    %v894 = vpack.c.b16 %v880, %v879
    %v895 = vpack.c.b16 %v882, %v881
    %v896 = vpack.c.b16 %v884, %v883
    %v897 = vpack.c.b16 %v886, %v885
    %v898 = vpack.c.b16 %v888, %v887
    %v899 = vpack.c.b16 %v890, %v889
    %v900 = vpack.c.b16 %v892, %v891
    %909 = vmatprep.subr.bf16.mxu0 0
    %910 = vmatpush1.bf16.msra.mxu0 %v893
    %911 = vmatprep.subr.bf16.mxu0 0
    %912 = vmatpush1.bf16.msra.mxu0 %v894
    %913 = vmatprep.subr.bf16.mxu0 0
    %914 = vmatpush1.bf16.msra.mxu0 %v895
    %915 = vmatprep.subr.bf16.mxu0 0
    %916 = vmatpush1.bf16.msra.mxu0 %v896
    %917 = vmatprep.subr.bf16.mxu0 0
    %918 = vmatpush1.bf16.msra.mxu0 %v897
    %919 = vmatprep.subr.bf16.mxu0 0
    %920 = vmatpush1.bf16.msra.mxu0 %v898
    %921 = vmatprep.subr.bf16.mxu0 0
    %922 = vmatpush1.bf16.msra.mxu0 %v899
    %923 = vmatprep.subr.bf16.mxu0 0
    %924 = vmatpush1.bf16.msra.mxu0 %v900
    %925 = vmatprep.subr.bf16.mxu0 0
    %926 = vmatpush1.bf16.msra.mxu0 0
    %927 = vmatprep.subr.bf16.mxu0 0
    %928 = vmatpush1.bf16.msra.mxu0 0
    %929 = vmatprep.subr.bf16.mxu0 0
    %930 = vmatpush1.bf16.msra.mxu0 0
    %931 = vmatprep.subr.bf16.mxu0 0
    %932 = vmatpush1.bf16.msra.mxu0 0
    %933 = vmatprep.subr.bf16.mxu0 0
    %934 = vmatpush1.bf16.msra.mxu0 0
    %935 = vmatprep.subr.bf16.mxu0 0
    %936 = vmatpush1.bf16.msra.mxu0 0
    %937 = vmatprep.subr.bf16.mxu0 0
    %938 = vmatpush1.bf16.msra.mxu0 0
    %939 = vmatprep.subr.bf16.mxu0 0
    %940 = vmatpush1.bf16.msra.mxu0 0
    %941 = vmatprep.mubr.bf16.mxu0 0
    %942 = vmatmul.mubr.bf16.gmra.mrb[0].mxu0 %v841
    %v943 = vpop.f32.mrb[0].mxu0
    %v944 = vadd.f32 0.0, %v943
    %v945 = vpop.f32.mrb[0].mxu0
    %v946 = vpop.f32.mrb[0].mxu0
    %v947 = vadd.f32 0.0, %v946
    %v948 = vpop.f32.mrb[0].mxu0
    %949 = vmatprep.mubr.bf16.mxu0 0
    %950 = vmatmul.mubr.bf16.gmra.mrb[0].mxu0 %v842
    %v951 = vpop.f32.mrb[0].mxu0
    %v952 = vadd.f32 0.0, %v951
    %v953 = vpop.f32.mrb[0].mxu0
    %v954 = vpop.f32.mrb[0].mxu0
    %v955 = vadd.f32 0.0, %v954
    %v956 = vpop.f32.mrb[0].mxu0
    %957 = vmatprep.mubr.bf16.mxu0 0
    %958 = vmatmul.mubr.bf16.gmra.mrb[0].mxu0 %v843
    %v959 = vpop.f32.mrb[0].mxu0
    %v960 = vadd.f32 0.0, %v959
    %v961 = vpop.f32.mrb[0].mxu0
    %v962 = vpop.f32.mrb[0].mxu0
    %v963 = vadd.f32 0.0, %v962
    %v964 = vpop.f32.mrb[0].mxu0
    %965 = vmatprep.mubr.bf16.mxu0 0
    %966 = vmatmul.mubr.bf16.gmra.mrb[0].mxu0 %v844
    %v967 = vpop.f32.mrb[0].mxu0
    %v968 = vadd.f32 0.0, %v967
    %v969 = vpop.f32.mrb[0].mxu0
    %v970 = vpop.f32.mrb[0].mxu0
    %v971 = vadd.f32 0.0, %v970
    %v972 = vpop.f32.mrb[0].mxu0
    %973 = vdwg.mxu0
    %v974 = vpack.c.bf16 %v947, %v944
    %v975 = vpack.c.bf16 %v955, %v952
    %v976 = vpack.c.bf16 %v963, %v960
    %v977 = vpack.c.bf16 %v971, %v968
    %978 = vmatprep.subr.bf16.mxu0 0
    %979 = vmatpush1.bf16.msra.mxu0 %v974
    %980 = vmatprep.subr.bf16.mxu0 0
    %981 = vmatpush1.bf16.msra.mxu0 %v975
    %982 = vmatprep.subr.bf16.mxu0 0
    %983 = vmatpush1.bf16.msra.mxu0 %v976
    %984 = vmatprep.subr.bf16.mxu0 0
    %985 = vmatpush1.bf16.msra.mxu0 %v977
    %986 = vmatprep.subr.bf16.mxu0 0
    %987 = vmatpush1.bf16.msra.mxu0 0
    %988 = vmatprep.subr.bf16.mxu0 0
    %989 = vmatpush1.bf16.msra.mxu0 0
    %990 = vmatprep.subr.bf16.mxu0 0
    %991 = vmatpush1.bf16.msra.mxu0 0
    %992 = vmatprep.subr.bf16.mxu0 0
    %993 = vmatpush1.bf16.msra.mxu0 0
    %994 = vmatprep.subr.bf16.mxu0 0
    %995 = vmatpush1.bf16.msra.mxu0 0
    %996 = vmatprep.subr.bf16.mxu0 0
    %997 = vmatpush1.bf16.msra.mxu0 0
    %998 = vmatprep.subr.bf16.mxu0 0
    %999 = vmatpush1.bf16.msra.mxu0 0
    %1000 = vmatprep.subr.bf16.mxu0 0
    %1001 = vmatpush1.bf16.msra.mxu0 0
    %1002 = vmatprep.subr.bf16.mxu0 0
    %1003 = vmatpush1.bf16.msra.mxu0 0
    %1004 = vmatprep.subr.bf16.mxu0 0
    %1005 = vmatpush1.bf16.msra.mxu0 0
    %1006 = vmatprep.subr.bf16.mxu0 0
    %1007 = vmatpush1.bf16.msra.mxu0 0
    %1008 = vmatprep.subr.bf16.mxu0 0
    %1009 = vmatpush1.bf16.msra.mxu0 0
    %1010 = vmatprep.mubr.bf16.mxu0 0
    %1011 = vmatmul.mubr.bf16.gmra.mrb[0].mxu0 %v241
    %v1012 = vpop.f32.mrb[0].mxu0
    %v1013 = vadd.f32 0.0, %v1012
    %v1014 = vpop.f32.mrb[0].mxu0
    %v1015 = vpop.f32.mrb[0].mxu0
    %v1016 = vadd.f32 0.0, %v1015
    %v1017 = vpop.f32.mrb[0].mxu0
    %1018 = vmatprep.mubr.bf16.mxu0 0
    %1019 = vmatmul.mubr.bf16.gmra.mrb[0].mxu0 %v244
    %v1020 = vpop.f32.mrb[0].mxu0
    %v1021 = vadd.f32 0.0, %v1020
    %v1022 = vpop.f32.mrb[0].mxu0
    %v1023 = vpop.f32.mrb[0].mxu0
    %v1024 = vadd.f32 0.0, %v1023
    %v1025 = vpop.f32.mrb[0].mxu0
    %1026 = vmatprep.mubr.bf16.mxu0 0
    %1027 = vmatmul.mubr.bf16.gmra.mrb[0].mxu0 %v247
    %v1028 = vpop.f32.mrb[0].mxu0
    %v1029 = vadd.f32 0.0, %v1028
    %v1030 = vpop.f32.mrb[0].mxu0
    %v1031 = vpop.f32.mrb[0].mxu0
    %v1032 = vadd.f32 0.0, %v1031
    %v1033 = vpop.f32.mrb[0].mxu0
    %1034 = vmatprep.mubr.bf16.mxu0 0
    %1035 = vmatmul.mubr.bf16.gmra.mrb[0].mxu0 %v250
    %v1036 = vpop.f32.mrb[0].mxu0
    %v1037 = vadd.f32 0.0, %v1036
    %v1038 = vpop.f32.mrb[0].mxu0
    %v1039 = vpop.f32.mrb[0].mxu0
    %v1040 = vadd.f32 0.0, %v1039
    %v1041 = vpop.f32.mrb[0].mxu0
    %1042 = vmatprep.mubr.bf16.mxu0 0
    %1043 = vmatmul.mubr.bf16.gmra.mrb[0].mxu0 %v253
    %v1044 = vpop.f32.mrb[0].mxu0
    %v1045 = vadd.f32 0.0, %v1044
    %v1046 = vpop.f32.mrb[0].mxu0
    %v1047 = vpop.f32.mrb[0].mxu0
    %v1048 = vadd.f32 0.0, %v1047
    %v1049 = vpop.f32.mrb[0].mxu0
    %1050 = vmatprep.mubr.bf16.mxu0 0
    %1051 = vmatmul.mubr.bf16.gmra.mrb[0].mxu0 %v256
    %v1052 = vpop.f32.mrb[0].mxu0
    %v1053 = vadd.f32 0.0, %v1052
    %v1054 = vpop.f32.mrb[0].mxu0
    %v1055 = vpop.f32.mrb[0].mxu0
    %v1056 = vadd.f32 0.0, %v1055
    %v1057 = vpop.f32.mrb[0].mxu0
    %1058 = vmatprep.mubr.bf16.mxu0 0
    %1059 = vmatmul.mubr.bf16.gmra.mrb[0].mxu0 %v259
    %v1060 = vpop.f32.mrb[0].mxu0
    %v1061 = vadd.f32 0.0, %v1060
    %v1062 = vpop.f32.mrb[0].mxu0
    %v1063 = vpop.f32.mrb[0].mxu0
    %v1064 = vadd.f32 0.0, %v1063
    %v1065 = vpop.f32.mrb[0].mxu0
    %1066 = vmatprep.mubr.bf16.mxu0 0
    %1067 = vmatmul.mubr.bf16.gmra.mrb[0].mxu0 %v262
    %v1068 = vpop.f32.mrb[0].mxu0
    %v1069 = vadd.f32 0.0, %v1068
    %v1070 = vpop.f32.mrb[0].mxu0
    %v1071 = vpop.f32.mrb[0].mxu0
    %v1072 = vadd.f32 0.0, %v1071
    %v1073 = vpop.f32.mrb[0].mxu0
    %1074 = vmatprep.mubr.bf16.mxu0 0
    %1075 = vmatmul.mubr.bf16.gmra.mrb[0].mxu0 %v265
    %v1076 = vpop.f32.mrb[0].mxu0
    %v1077 = vadd.f32 0.0, %v1076
    %v1078 = vpop.f32.mrb[0].mxu0
    %v1079 = vpop.f32.mrb[0].mxu0
    %v1080 = vadd.f32 0.0, %v1079
    %v1081 = vpop.f32.mrb[0].mxu0
    %1082 = vmatprep.mubr.bf16.mxu0 0
    %1083 = vmatmul.mubr.bf16.gmra.mrb[0].mxu0 %v268
    %v1084 = vpop.f32.mrb[0].mxu0
    %v1085 = vadd.f32 0.0, %v1084
    %v1086 = vpop.f32.mrb[0].mxu0
    %v1087 = vpop.f32.mrb[0].mxu0
    %v1088 = vadd.f32 0.0, %v1087
    %v1089 = vpop.f32.mrb[0].mxu0
    %1090 = vmatprep.mubr.bf16.mxu0 0
    %1091 = vmatmul.mubr.bf16.gmra.mrb[0].mxu0 %v271
    %v1092 = vpop.f32.mrb[0].mxu0
    %v1093 = vadd.f32 0.0, %v1092
    %v1094 = vpop.f32.mrb[0].mxu0
    %v1095 = vpop.f32.mrb[0].mxu0
    %v1096 = vadd.f32 0.0, %v1095
    %v1097 = vpop.f32.mrb[0].mxu0
    %1098 = vmatprep.mubr.bf16.mxu0 0
    %1099 = vmatmul.mubr.bf16.gmra.mrb[0].mxu0 %v274
    %v1100 = vpop.f32.mrb[0].mxu0
    %v1101 = vadd.f32 0.0, %v1100
    %v1102 = vpop.f32.mrb[0].mxu0
    %v1103 = vpop.f32.mrb[0].mxu0
    %v1104 = vadd.f32 0.0, %v1103
    %v1105 = vpop.f32.mrb[0].mxu0
    %1106 = vdwg.mxu0
    %v1107 = vld [vmem:[%s5] sm:$0xff]
    %v1108 = vld [vmem:[%s5 + $0x8] sm:$0xff]
    %v1109 = vld [vmem:[%s5 + $0x10] sm:$0xff]
    %v1110 = vld [vmem:[%s5 + $0x18] sm:$0xff]
    %v1111 = vld [vmem:[%s5 + $0x20] sm:$0xff]
    %v1112 = vld [vmem:[%s5 + $0x28] sm:$0xff]
    %v1113 = vld [vmem:[%s5 + $0x30] sm:$0xff]
    %v1114 = vld [vmem:[%s5 + $0x38] sm:$0xff]
    %v1115 = vld [vmem:[%s5 + $0x40] sm:$0xff]
    %v1116 = vld [vmem:[%s5 + $0x48] sm:$0xff]
    %v1117 = vld [vmem:[%s5 + $0x50] sm:$0xff]
    %v1118 = vld [vmem:[%s5 + $0x58] sm:$0xff]
    %v1119 = vld [vmem:[%s5 + $0x60] sm:$0xff]
    %v1120 = vld [vmem:[%s5 + $0x68] sm:$0xff]
    %v1121 = vld [vmem:[%s5 + $0x70] sm:$0xff]
    %v1122 = vld [vmem:[%s5 + $0x78] sm:$0xff]
    %v1123 = vld [vmem:[%s5 + $0x80] sm:$0xff]
    %v1124 = vld [vmem:[%s5 + $0x88] sm:$0xff]
    %v1125 = vld [vmem:[%s5 + $0x90] sm:$0xff]
    %v1126 = vld [vmem:[%s5 + $0x98] sm:$0xff]
    %v1127 = vld [vmem:[%s5 + $0xa0] sm:$0xff]
    %v1128 = vld [vmem:[%s5 + $0xa8] sm:$0xff]
    %v1129 = vld [vmem:[%s5 + $0xb0] sm:$0xff]
    %v1130 = vld [vmem:[%s5 + $0xb8] sm:$0xff]
    %1132 = vset.pattern.permute.xlu0 0
    %1133 = vperm.xlu0 %1132, %v1107
    %v1134 = vpop.permute.xlu0 %1133
    %1137 = vset.pattern.permute.xlu0 0
    %1138 = vperm.xlu0 %1137, %v1108
    %v1139 = vpop.permute.xlu0 %1138
    %1142 = vset.pattern.permute.xlu0 0
    %1143 = vperm.xlu0 %1142, %v1109
    %v1144 = vpop.permute.xlu0 %1143
    %1147 = vset.pattern.permute.xlu0 0
    %1148 = vperm.xlu0 %1147, %v1110
    %v1149 = vpop.permute.xlu0 %1148
    %1152 = vset.pattern.permute.xlu0 0
    %1153 = vperm.xlu0 %1152, %v1111
    %v1154 = vpop.permute.xlu0 %1153
    %1157 = vset.pattern.permute.xlu0 0
    %1158 = vperm.xlu0 %1157, %v1112
    %v1159 = vpop.permute.xlu0 %1158
    %1162 = vset.pattern.permute.xlu0 0
    %1163 = vperm.xlu0 %1162, %v1113
    %v1164 = vpop.permute.xlu0 %1163
    %1167 = vset.pattern.permute.xlu0 0
    %1168 = vperm.xlu0 %1167, %v1114
    %v1169 = vpop.permute.xlu0 %1168
    %1172 = vset.pattern.permute.xlu0 0
    %1173 = vperm.xlu0 %1172, %v1115
    %v1174 = vpop.permute.xlu0 %1173
    %1177 = vset.pattern.permute.xlu0 0
    %1178 = vperm.xlu0 %1177, %v1116
    %v1179 = vpop.permute.xlu0 %1178
    %1182 = vset.pattern.permute.xlu0 0
    %1183 = vperm.xlu0 %1182, %v1117
    %v1184 = vpop.permute.xlu0 %1183
    %1187 = vset.pattern.permute.xlu0 0
    %1188 = vperm.xlu0 %1187, %v1118
    %v1189 = vpop.permute.xlu0 %1188
    %1192 = vset.pattern.permute.xlu0 0
    %1193 = vperm.xlu0 %1192, %v1119
    %v1194 = vpop.permute.xlu0 %1193
    %1197 = vset.pattern.permute.xlu0 0
    %1198 = vperm.xlu0 %1197, %v1120
    %v1199 = vpop.permute.xlu0 %1198
    %1202 = vset.pattern.permute.xlu0 0
    %1203 = vperm.xlu0 %1202, %v1121
    %v1204 = vpop.permute.xlu0 %1203
    %1207 = vset.pattern.permute.xlu0 0
    %1208 = vperm.xlu0 %1207, %v1122
    %v1209 = vpop.permute.xlu0 %1208
    %1212 = vset.pattern.permute.xlu0 0
    %1213 = vperm.xlu0 %1212, %v1123
    %v1214 = vpop.permute.xlu0 %1213
    %1217 = vset.pattern.permute.xlu0 0
    %1218 = vperm.xlu0 %1217, %v1124
    %v1219 = vpop.permute.xlu0 %1218
    %1222 = vset.pattern.permute.xlu0 0
    %1223 = vperm.xlu0 %1222, %v1125
    %v1224 = vpop.permute.xlu0 %1223
    %1227 = vset.pattern.permute.xlu0 0
    %1228 = vperm.xlu0 %1227, %v1126
    %v1229 = vpop.permute.xlu0 %1228
    %1232 = vset.pattern.permute.xlu0 0
    %1233 = vperm.xlu0 %1232, %v1127
    %v1234 = vpop.permute.xlu0 %1233
    %1237 = vset.pattern.permute.xlu0 0
    %1238 = vperm.xlu0 %1237, %v1128
    %v1239 = vpop.permute.xlu0 %1238
    %1242 = vset.pattern.permute.xlu0 0
    %1243 = vperm.xlu0 %1242, %v1129
    %v1244 = vpop.permute.xlu0 %1243
    %1247 = vset.pattern.permute.xlu0 0
    %1248 = vperm.xlu0 %1247, %v1130
    %v1249 = vpop.permute.xlu0 %1248
    %v1251 = vmul.f32 %v1134, %v1013
    %v1252 = vmul.f32 %v1139, %v1016
    %v1253 = vmul.f32 %v1144, %v1021
    %v1254 = vmul.f32 %v1149, %v1024
    %v1255 = vmul.f32 %v1154, %v1029
    %v1256 = vmul.f32 %v1159, %v1032
    %v1257 = vmul.f32 %v1164, %v1037
    %v1258 = vmul.f32 %v1169, %v1040
    %v1259 = vmul.f32 %v1174, %v1045
    %v1260 = vmul.f32 %v1179, %v1048
    %v1261 = vmul.f32 %v1184, %v1053
    %v1262 = vmul.f32 %v1189, %v1056
    %v1263 = vmul.f32 %v1194, %v1061
    %v1264 = vmul.f32 %v1199, %v1064
    %v1265 = vmul.f32 %v1204, %v1069
    %v1266 = vmul.f32 %v1209, %v1072
    %v1267 = vmul.f32 %v1214, %v1077
    %v1268 = vmul.f32 %v1219, %v1080
    %v1269 = vmul.f32 %v1224, %v1085
    %v1270 = vmul.f32 %v1229, %v1088
    %v1271 = vmul.f32 %v1234, %v1093
    %v1272 = vmul.f32 %v1239, %v1096
    %v1273 = vmul.f32 %v1244, %v1101
    %v1274 = vmul.f32 %v1249, %v1104
    %v1275 = vpack.c.bf16 %v1252, %v1251
    %v1276 = vpack.c.bf16 %v1254, %v1253
    %v1277 = vpack.c.bf16 %v1256, %v1255
    %v1278 = vpack.c.bf16 %v1258, %v1257
    %v1279 = vpack.c.bf16 %v1260, %v1259
    %v1280 = vpack.c.bf16 %v1262, %v1261
    %v1281 = vpack.c.bf16 %v1264, %v1263
    %v1282 = vpack.c.bf16 %v1266, %v1265
    %v1283 = vpack.c.bf16 %v1268, %v1267
    %v1284 = vpack.c.bf16 %v1270, %v1269
    %v1285 = vpack.c.bf16 %v1272, %v1271
    %v1286 = vpack.c.bf16 %v1274, %v1273
    %1287 = vmatprep.subr.bf16.mxu0 0
    %1288 = vmatpush1.bf16.msra.mxu0 %v1279
    %1289 = vmatprep.subr.bf16.mxu0 0
    %1290 = vmatpush1.bf16.msra.mxu0 %v1280
    %1291 = vmatprep.subr.bf16.mxu0 0
    %1292 = vmatpush1.bf16.msra.mxu0 %v1281
    %1293 = vmatprep.subr.bf16.mxu0 0
    %1294 = vmatpush1.bf16.msra.mxu0 %v1282
    %1295 = vmatprep.subr.bf16.mxu0 0
    %1296 = vmatpush1.bf16.msra.mxu0 0
    %1297 = vmatprep.subr.bf16.mxu0 0
    %1298 = vmatpush1.bf16.msra.mxu0 0
    %1299 = vmatprep.subr.bf16.mxu0 0
    %1300 = vmatpush1.bf16.msra.mxu0 0
    %1301 = vmatprep.subr.bf16.mxu0 0
    %1302 = vmatpush1.bf16.msra.mxu0 0
    %1303 = vmatprep.subr.bf16.mxu0 0
    %1304 = vmatpush1.bf16.msra.mxu0 0
    %1305 = vmatprep.subr.bf16.mxu0 0
    %1306 = vmatpush1.bf16.msra.mxu0 0
    %1307 = vmatprep.subr.bf16.mxu0 0
    %1308 = vmatpush1.bf16.msra.mxu0 0
    %1309 = vmatprep.subr.bf16.mxu0 0
    %1310 = vmatpush1.bf16.msra.mxu0 0
    %1311 = vmatprep.subr.bf16.mxu0 0
    %1312 = vmatpush1.bf16.msra.mxu0 0
    %1313 = vmatprep.subr.bf16.mxu0 0
    %1314 = vmatpush1.bf16.msra.mxu0 0
    %1315 = vmatprep.subr.bf16.mxu0 0
    %1316 = vmatpush1.bf16.msra.mxu0 0
    %1317 = vmatprep.subr.bf16.mxu0 0
    %1318 = vmatpush1.bf16.msra.mxu0 0
    %1319 = vmatprep.mubr.bf16.mxu0 0
    %1320 = vmatmul.mubr.bf16.gmra.mrb[0].mxu0 %v253
    %v1321 = vpop.f32.mrb[0].mxu0
    %v1322 = vadd.f32 0.0, %v1321
    %v1323 = vpop.f32.mrb[0].mxu0
    %v1324 = vpop.f32.mrb[0].mxu0
    %v1325 = vadd.f32 0.0, %v1324
    %v1326 = vpop.f32.mrb[0].mxu0
    %1327 = vmatprep.mubr.bf16.mxu0 0
    %1328 = vmatmul.mubr.bf16.gmra.mrb[0].mxu0 %v256
    %v1329 = vpop.f32.mrb[0].mxu0
    %v1330 = vadd.f32 0.0, %v1329
    %v1331 = vpop.f32.mrb[0].mxu0
    %v1332 = vpop.f32.mrb[0].mxu0
    %v1333 = vadd.f32 0.0, %v1332
    %v1334 = vpop.f32.mrb[0].mxu0
    %1335 = vmatprep.mubr.bf16.mxu0 0
    %1336 = vmatmul.mubr.bf16.gmra.mrb[0].mxu0 %v259
    %v1337 = vpop.f32.mrb[0].mxu0
    %v1338 = vadd.f32 0.0, %v1337
    %v1339 = vpop.f32.mrb[0].mxu0
    %v1340 = vpop.f32.mrb[0].mxu0
    %v1341 = vadd.f32 0.0, %v1340
    %v1342 = vpop.f32.mrb[0].mxu0
    %1343 = vmatprep.mubr.bf16.mxu0 0
    %1344 = vmatmul.mubr.bf16.gmra.mrb[0].mxu0 %v262
    %v1345 = vpop.f32.mrb[0].mxu0
    %v1346 = vadd.f32 0.0, %v1345
    %v1347 = vpop.f32.mrb[0].mxu0
    %v1348 = vpop.f32.mrb[0].mxu0
    %v1349 = vadd.f32 0.0, %v1348
    %v1350 = vpop.f32.mrb[0].mxu0
    %1351 = vdwg.mxu0
    %1352 = vmatprep.subr.bf16.mxu0 0
    %1353 = vmatpush1.bf16.msra.mxu0 %v1275
    %1354 = vmatprep.subr.bf16.mxu0 0
    %1355 = vmatpush1.bf16.msra.mxu0 %v1276
    %1356 = vmatprep.subr.bf16.mxu0 0
    %1357 = vmatpush1.bf16.msra.mxu0 %v1277
    %1358 = vmatprep.subr.bf16.mxu0 0
    %1359 = vmatpush1.bf16.msra.mxu0 %v1278
    %1360 = vmatprep.subr.bf16.mxu0 0
    %1361 = vmatpush1.bf16.msra.mxu0 0
    %1362 = vmatprep.subr.bf16.mxu0 0
    %1363 = vmatpush1.bf16.msra.mxu0 0
    %1364 = vmatprep.subr.bf16.mxu0 0
    %1365 = vmatpush1.bf16.msra.mxu0 0
    %1366 = vmatprep.subr.bf16.mxu0 0
    %1367 = vmatpush1.bf16.msra.mxu0 0
    %1368 = vmatprep.subr.bf16.mxu0 0
    %1369 = vmatpush1.bf16.msra.mxu0 0
    %1370 = vmatprep.subr.bf16.mxu0 0
    %1371 = vmatpush1.bf16.msra.mxu0 0
    %1372 = vmatprep.subr.bf16.mxu0 0
    %1373 = vmatpush1.bf16.msra.mxu0 0
    %1374 = vmatprep.subr.bf16.mxu0 0
    %1375 = vmatpush1.bf16.msra.mxu0 0
    %1376 = vmatprep.subr.bf16.mxu0 0
    %1377 = vmatpush1.bf16.msra.mxu0 0
    %1378 = vmatprep.subr.bf16.mxu0 0
    %1379 = vmatpush1.bf16.msra.mxu0 0
    %1380 = vmatprep.subr.bf16.mxu0 0
    %1381 = vmatpush1.bf16.msra.mxu0 0
    %1382 = vmatprep.subr.bf16.mxu0 0
    %1383 = vmatpush1.bf16.msra.mxu0 0
    %1384 = vmatprep.mubr.bf16.mxu0 0
    %1385 = vmatmul.mubr.bf16.gmra.mrb[0].mxu0 %v241
    %v1386 = vpop.f32.mrb[0].mxu0
    %v1387 = vadd.f32 %v1322, %v1386
    %v1388 = vpop.f32.mrb[0].mxu0
    %v1389 = vpop.f32.mrb[0].mxu0
    %v1390 = vadd.f32 %v1325, %v1389
    %v1391 = vpop.f32.mrb[0].mxu0
    %1392 = vmatprep.mubr.bf16.mxu0 0
    %1393 = vmatmul.mubr.bf16.gmra.mrb[0].mxu0 %v244
    %v1394 = vpop.f32.mrb[0].mxu0
    %v1395 = vadd.f32 %v1330, %v1394
    %v1396 = vpop.f32.mrb[0].mxu0
    %v1397 = vpop.f32.mrb[0].mxu0
    %v1398 = vadd.f32 %v1333, %v1397
    %v1399 = vpop.f32.mrb[0].mxu0
    %1400 = vmatprep.mubr.bf16.mxu0 0
    %1401 = vmatmul.mubr.bf16.gmra.mrb[0].mxu0 %v247
    %v1402 = vpop.f32.mrb[0].mxu0
    %v1403 = vadd.f32 %v1338, %v1402
    %v1404 = vpop.f32.mrb[0].mxu0
    %v1405 = vpop.f32.mrb[0].mxu0
    %v1406 = vadd.f32 %v1341, %v1405
    %v1407 = vpop.f32.mrb[0].mxu0
    %1408 = vmatprep.mubr.bf16.mxu0 0
    %1409 = vmatmul.mubr.bf16.gmra.mrb[0].mxu0 %v250
    %v1410 = vpop.f32.mrb[0].mxu0
    %v1411 = vadd.f32 %v1346, %v1410
    %v1412 = vpop.f32.mrb[0].mxu0
    %v1413 = vpop.f32.mrb[0].mxu0
    %v1414 = vadd.f32 %v1349, %v1413
    %v1415 = vpop.f32.mrb[0].mxu0
    %1416 = vdwg.mxu0
    %1417 = vmatprep.subr.bf16.mxu0 0
    %1418 = vmatpush1.bf16.msra.mxu0 %v1283
    %1419 = vmatprep.subr.bf16.mxu0 0
    %1420 = vmatpush1.bf16.msra.mxu0 %v1284
    %1421 = vmatprep.subr.bf16.mxu0 0
    %1422 = vmatpush1.bf16.msra.mxu0 %v1285
    %1423 = vmatprep.subr.bf16.mxu0 0
    %1424 = vmatpush1.bf16.msra.mxu0 %v1286
    %1425 = vmatprep.subr.bf16.mxu0 0
    %1426 = vmatpush1.bf16.msra.mxu0 0
    %1427 = vmatprep.subr.bf16.mxu0 0
    %1428 = vmatpush1.bf16.msra.mxu0 0
    %1429 = vmatprep.subr.bf16.mxu0 0
    %1430 = vmatpush1.bf16.msra.mxu0 0
    %1431 = vmatprep.subr.bf16.mxu0 0
    %1432 = vmatpush1.bf16.msra.mxu0 0
    %1433 = vmatprep.subr.bf16.mxu0 0
    %1434 = vmatpush1.bf16.msra.mxu0 0
    %1435 = vmatprep.subr.bf16.mxu0 0
    %1436 = vmatpush1.bf16.msra.mxu0 0
    %1437 = vmatprep.subr.bf16.mxu0 0
    %1438 = vmatpush1.bf16.msra.mxu0 0
    %1439 = vmatprep.subr.bf16.mxu0 0
    %1440 = vmatpush1.bf16.msra.mxu0 0
    %1441 = vmatprep.subr.bf16.mxu0 0
    %1442 = vmatpush1.bf16.msra.mxu0 0
    %1443 = vmatprep.subr.bf16.mxu0 0
    %1444 = vmatpush1.bf16.msra.mxu0 0
    %1445 = vmatprep.subr.bf16.mxu0 0
    %1446 = vmatpush1.bf16.msra.mxu0 0
    %1447 = vmatprep.subr.bf16.mxu0 0
    %1448 = vmatpush1.bf16.msra.mxu0 0
    %1449 = vmatprep.mubr.bf16.mxu0 0
    %1450 = vmatmul.mubr.bf16.gmra.mrb[0].mxu0 %v265
    %v1451 = vpop.f32.mrb[0].mxu0
    %v1452 = vadd.f32 0.0, %v1451
    %v1453 = vpop.f32.mrb[0].mxu0
    %v1454 = vpop.f32.mrb[0].mxu0
    %v1455 = vadd.f32 0.0, %v1454
    %v1456 = vpop.f32.mrb[0].mxu0
    %1457 = vmatprep.mubr.bf16.mxu0 0
    %1458 = vmatmul.mubr.bf16.gmra.mrb[0].mxu0 %v268
    %v1459 = vpop.f32.mrb[0].mxu0
    %v1460 = vadd.f32 0.0, %v1459
    %v1461 = vpop.f32.mrb[0].mxu0
    %v1462 = vpop.f32.mrb[0].mxu0
    %v1463 = vadd.f32 0.0, %v1462
    %v1464 = vpop.f32.mrb[0].mxu0
    %1465 = vmatprep.mubr.bf16.mxu0 0
    %1466 = vmatmul.mubr.bf16.gmra.mrb[0].mxu0 %v271
    %v1467 = vpop.f32.mrb[0].mxu0
    %v1468 = vadd.f32 0.0, %v1467
    %v1469 = vpop.f32.mrb[0].mxu0
    %v1470 = vpop.f32.mrb[0].mxu0
    %v1471 = vadd.f32 0.0, %v1470
    %v1472 = vpop.f32.mrb[0].mxu0
    %1473 = vmatprep.mubr.bf16.mxu0 0
    %1474 = vmatmul.mubr.bf16.gmra.mrb[0].mxu0 %v274
    %v1475 = vpop.f32.mrb[0].mxu0
    %v1476 = vadd.f32 0.0, %v1475
    %v1477 = vpop.f32.mrb[0].mxu0
    %v1478 = vpop.f32.mrb[0].mxu0
    %v1479 = vadd.f32 0.0, %v1478
    %v1480 = vpop.f32.mrb[0].mxu0
    %1481 = vdwg.mxu0
    %v1482 = vadd.f32 %v1387, %v1452
    %v1483 = vadd.f32 %v1390, %v1455
    %v1484 = vadd.f32 %v1395, %v1460
    %v1485 = vadd.f32 %v1398, %v1463
    %v1486 = vadd.f32 %v1403, %v1468
    %v1487 = vadd.f32 %v1406, %v1471
    %v1488 = vadd.f32 %v1411, %v1476
    %v1489 = vadd.f32 %v1414, %v1479
    %v1490 = vld [vmem:[%s7] sm:$0x1]
    %v1492 = vlaneseq
    %v1493 = vshrl.u32 %v1492, 7
    %v1494 = vsub.s32 0, %v1493
    %v1495 = vrot.slane %v1490, %v1494
    %v1497 = vadd.f32 %v1482, %v1495
    %v1498 = vadd.f32 %v1483, %v1495
    %v1499 = vadd.f32 %v1484, %v1495
    %v1500 = vadd.f32 %v1485, %v1495
    %v1501 = vadd.f32 %v1486, %v1495
    %v1502 = vadd.f32 %v1487, %v1495
    %v1503 = vadd.f32 %v1488, %v1495
    %v1504 = vadd.f32 %v1489, %v1495
    %1505 = vst [vmem:[#allocation2] sm:$0xff] %v1497
    %1506 = vst [vmem:[#allocation2 + $0x8] sm:$0xff] %v1498
    %1507 = vst [vmem:[#allocation2 + $0x10] sm:$0xff] %v1499
    %1508 = vst [vmem:[#allocation2 + $0x18] sm:$0xff] %v1500
    %1509 = vst [vmem:[#allocation2 + $0x20] sm:$0xff] %v1501
    %1510 = vst [vmem:[#allocation2 + $0x28] sm:$0xff] %v1502
    %1511 = vst [vmem:[#allocation2 + $0x30] sm:$0xff] %v1503
    %1512 = vst [vmem:[#allocation2 + $0x38] sm:$0xff] %v1504
    // Predicated region
    $region42: #{tpu_custom_call.1} parent=1 // pred_check
      _
    $region43: #{tpu_custom_call.1} parent=1 // pred_check_branch
      %1514 = sbr.rel (0) target = $region45
    $region44: #{tpu_custom_call.1} parent=1 // pred_region
      %s1516 = ssub.s32 1024, 1024
      %1517 = vsyncadd [#allocation3], %s1516
      %s1518 = sshll.u32 [#allocation2], 4
      %s1519 = int_to_ptr.vmem [resolvable:$true] %s1518
      %1524 = dma.vmem_to_hbm [thread:$0]  %s1519, 1024, %s10, [#allocation3], 128, 128, 8
    $region45: #{tpu_custom_call.1} parent=1 // pred_fallthru
      _
    // Predicated region
    $region46: #{tpu_custom_call.1} parent=1 // pred_check
      _
    $region47: #{tpu_custom_call.1} parent=1 // pred_check_branch
      %1526 = sbr.rel (0) target = $region49
    $region48: #{tpu_custom_call.1} parent=1 // pred_region
      %1527 = dma.done [#allocation3], 1024
    $region49: #{tpu_custom_call.1} parent=1 // pred_fallthru
      _
    %1528 = vsyncpa [#allocation3], 1

</llo_original>
